<compile_context>
chip_gen: v7x
topology: tpu7x:2x2x1
jax: 0.10.0
libtpu: 0.0.40
codegen_flags: <defaults>
</compile_context>

<pallas_src>
import functools
import math

import jax
import jax.numpy as jnp
import numpy as np
from jax import lax
from jax.experimental import pallas as pl
from jax.experimental.pallas import tpu as pltpu

EPS = 1e-5        # norm_eps
NEG_INF = -1e30   # causal mask value (applied on f32 scores)


# ----------------------------- shared math ----------------------------------
def _rmsnorm(v, w):
    v = v.astype(jnp.float32)
    var = jnp.mean(v * v, axis=-1, keepdims=True)
    return v * lax.rsqrt(var + EPS) * w.astype(jnp.float32)


def _apply_rotary(v, cos, sin_signed, *, use_roll):
    # GPT-NeoX half-split rotary with the rotate_half sign folded into sin:
    #   out = v * cos + swap_halves(v) * sin_signed,  sin_signed = [-sin1, sin2].
    d = v.shape[-1] // 2
    if use_roll:
        # lane rotate on the XLU slot (idle while stage-1 MXU matmuls dominate)
        return v * cos + pltpu.roll(v, shift=d, axis=-1) * sin_signed
    v1, v2 = v[..., :d], v[..., d:]
    c1, c2 = cos[..., :d], cos[..., d:]
    s1, s2 = sin_signed[..., :d], sin_signed[..., d:]
    return jnp.concatenate([v1 * c1 + v2 * s1, v2 * c2 + v1 * s2], axis=-1)


def _rotate_half(v):   # pure-JAX reference only
    d = v.shape[-1] // 2
    return jnp.concatenate([-v[..., d:], v[..., :d]], axis=-1)


def _vmem_limit_bytes():
    """Generation-aware VMEM limit: ~104 MiB on 128-MiB parts, ~48 MiB on v7x."""
    try:
        cap = int(pltpu.get_tpu_info().vmem_capacity_bytes)
    except Exception:
        cap = 128 * 1024 * 1024
    return int(max(32 * 1024 * 1024,
                   min(cap - 16 * 1024 * 1024, 104 * 1024 * 1024)))


@functools.lru_cache(maxsize=1)
def _single_buffer_supported():
    """Probe whether pl.Buffered(1) single-buffering of a grid-invariant input
    compiles, runs and is numerically correct on this jax/libtpu."""
    try:
        def _k(a_ref, w_ref, o_ref):
            o_ref[...] = a_ref[...] + w_ref[...]
        f = pl.pallas_call(
            _k,
            grid=(2,),
            in_specs=[pl.BlockSpec((8, 128), lambda i: (i, 0)),
                      pl.BlockSpec((8, 128), lambda i: (0, 0),
                                   pipeline_mode=pl.Buffered(1))],
            out_specs=pl.BlockSpec((8, 128), lambda i: (i, 0)),
            out_shape=jax.ShapeDtypeStruct((16, 128), jnp.float32))
        a = jnp.ones((16, 128), jnp.float32)
        w = jnp.full((8, 128), 2.0, jnp.float32)
        r = jax.block_until_ready(f(a, w))
        return bool(jnp.allclose(r, 3.0))
    except Exception:
        return False


def _invariant_spec(block_shape, index_map):
    """BlockSpec for a grid-invariant operand: single-buffered when supported so
    large resident weights are not held twice in VMEM (critical on v7x)."""
    if _single_buffer_supported():
        return pl.BlockSpec(block_shape, index_map, pipeline_mode=pl.Buffered(1))
    return pl.BlockSpec(block_shape, index_map)


# --------------- stage 1: norm + fused QKV + QK-norm + rotary ----------------
def _qkv_rope_kernel(x_ref, cos_ref, sin_ref, attn_nw_ref, wqkv_ref,
                     qnw_ref, knw_ref, q_out_ref, k_out_ref, v_out_ref,
                     *, n_heads, n_kv_heads, head_dim, use_roll):
    hd = head_dim
    dq = n_heads * hd
    dkv = n_kv_heads * hd

    xn = _rmsnorm(x_ref[0], attn_nw_ref[...]).astype(jnp.bfloat16)    # (TS, D)

    # one MXU pass over xn for Q, K and V together
    qkv = jnp.dot(xn, wqkv_ref[...], preferred_element_type=jnp.float32)

    cosb = cos_ref[...].astype(jnp.float32)                            # (TS, hd)
    sinb = sin_ref[...].astype(jnp.float32)                            # sign-folded
    inv_scale = 1.0 / math.sqrt(hd)

    # per-head QK-RMSNorm + rotary, emitted head-major (H, TS, hd)
    q_heads = []
    for h in range(n_heads):
        qh = _rmsnorm(qkv[:, h * hd:(h + 1) * hd], qnw_ref[...])
        qh = _apply_rotary(qh, cosb, sinb, use_roll=use_roll) * inv_scale
        q_heads.append(qh.astype(jnp.bfloat16))
    q_out_ref[0] = jnp.stack(q_heads, axis=0)

    k_heads, v_heads = [], []
    for h in range(n_kv_heads):
        kh = _rmsnorm(qkv[:, dq + h * hd: dq + (h + 1) * hd], knw_ref[...])
        kh = _apply_rotary(kh, cosb, sinb, use_roll=use_roll)
        k_heads.append(kh.astype(jnp.bfloat16))
        v_heads.append(
            qkv[:, dq + dkv + h * hd: dq + dkv + (h + 1) * hd].astype(jnp.bfloat16))
    k_out_ref[0] = jnp.stack(k_heads, axis=0)
    v_out_ref[0] = jnp.stack(v_heads, axis=0)


# ----------------- stage 2: GQA-grouped flash attention ----------------------
def _flash_attn_kernel(q_ref, k_ref, v_ref, attn_out_ref, m_sc, l_sc, acc_sc,
                       *, n_rep, tile_q, tile_k):
    qi = pl.program_id(2)
    ki = pl.program_id(3)
    hd = q_ref.shape[-1]

    @pl.when(ki == 0)                     # new (b, kv-group, q-tile): reset state
    def _():
        m_sc[...] = jnp.full_like(m_sc, NEG_INF)
        l_sc[...] = jnp.zeros_like(l_sc)
        acc_sc[...] = jnp.zeros_like(acc_sc)

    def accumulate(apply_mask):
        # all n_rep query heads of this KV group, stacked along M
        q = q_ref[0].reshape(n_rep * tile_q, hd)          # bf16, pre-scaled
        k = k_ref[0, 0]                                   # (TK, hd) bf16
        v = v_ref[0, 0]                                   # (TK, hd) bf16

        s = lax.dot_general(q, k, (((1,), (1,)), ((), ())),
                            preferred_element_type=jnp.float32)   # (n_rep*TQ, TK)
        if apply_mask:   # only the diagonal tile needs the causal mask
            q_off = lax.broadcasted_iota(jnp.int32, (n_rep, tile_q, tile_k), 1)
            q_off = q_off.reshape(n_rep * tile_q, tile_k)
            k_off = lax.broadcasted_iota(jnp.int32, (n_rep * tile_q, tile_k), 1)
            s = jnp.where(ki * tile_k + k_off <= qi * tile_q + q_off, s, NEG_INF)

        m_new = jnp.maximum(m_sc[...], jnp.max(s, axis=-1, keepdims=True))
        alpha = jnp.exp(m_sc[...] - m_new)
        p = jnp.exp(s - m_new)
        l_sc[...] = alpha * l_sc[...] + jnp.sum(p, axis=-1, keepdims=True)
        acc_sc[...] = alpha * acc_sc[...] + jnp.dot(
            p.astype(jnp.bfloat16), v, preferred_element_type=jnp.float32)
        m_sc[...] = m_new

    @pl.when(ki < qi)                     # fully below diagonal: no mask needed
    def _():
        accumulate(apply_mask=False)

    @pl.when(ki == qi)                    # diagonal tile: mask + finalize
    def _():
        accumulate(apply_mask=True)
        inv_l = pl.reciprocal(l_sc[...], approx=True)
        out = (acc_sc[...] * inv_l).astype(attn_out_ref.dtype)
        attn_out_ref[0] = out.reshape(n_rep, tile_q, hd)
    # ki > qi: fully masked -> no compute, and the clamped index_map means no DMA.


# ------------- stage 3: output projection (head reduction) + residual --------
def _wo_residual_kernel(attn_ref, wo_ref, x_ref, h_ref, acc_sc):
    hi = pl.program_id(2)
    nh = pl.num_programs(2)

    @pl.when(hi == 0)
    def _():
        acc_sc[...] = x_ref[0].astype(jnp.float32)        # start from residual

    acc_sc[...] += jnp.dot(attn_ref[0, 0], wo_ref[0],
                           preferred_element_type=jnp.float32)

    @pl.when(hi == nh - 1)
    def _():
        h_ref[0] = acc_sc[...].astype(h_ref.dtype)


# ------------------- stage 4: F-tiled SwiGLU MLP + residual -------------------
def _swiglu_mlp_kernel(h_ref, ffn_nw_ref, w1_ref, w3_ref, w2_ref, out_ref,
                       hn_sc, acc_sc):
    fi = pl.program_id(1)
    nf = pl.num_programs(1)

    @pl.when(fi == 0)
    def _():
        hn_sc[...] = _rmsnorm(h_ref[...], ffn_nw_ref[...]).astype(jnp.bfloat16)
        acc_sc[...] = jnp.zeros_like(acc_sc)

    hn = hn_sc[...]                                                    # (TR, D)
    g = jnp.dot(hn, w1_ref[...], preferred_element_type=jnp.float32)   # (TR, TF)
    u = jnp.dot(hn, w3_ref[...], preferred_element_type=jnp.float32)
    f = (jax.nn.silu(g) * u).astype(jnp.bfloat16)
    acc_sc[...] += jnp.dot(f, w2_ref[...], preferred_element_type=jnp.float32)

    @pl.when(fi == nf - 1)
    def _():
        out_ref[...] = (h_ref[...].astype(jnp.float32)
                        + acc_sc[...]).astype(out_ref.dtype)


# ------------------------------ wrapper --------------------------------------
def transformer_block(x, cos, sin, params, *, n_heads, n_kv_heads, head_dim,
                      tile_seq=256, tile_attn=256, tile_rows=256, tile_f=512):
    B, S, D = x.shape
    hd = head_dim
    Dq = n_heads * hd
    Dkv = n_kv_heads * hd
    Dtot = Dq + 2 * Dkv
    F = params["w1"].shape[1]
    assert n_heads % n_kv_heads == 0 and hd % 2 == 0
    n_rep = n_heads // n_kv_heads
    G = n_kv_heads
    R = B * S

    ts1 = min(tile_seq, S)
    ta = min(tile_attn, S)          # tile_q == tile_k
    ts3 = min(tile_rows, S)
    ts4 = min(tile_rows, R)
    tf = min(tile_f, F)
    assert S % ts1 == 0 and S % ta == 0 and S % ts3 == 0 and R % ts4 == 0
    assert F % tf == 0 and (tf % 128 == 0 or tf == F)
    assert ts1 % 8 == 0 and ta % 8 == 0 and ts3 % 8 == 0 and ts4 % 8 == 0

    bf16 = jnp.bfloat16
    wqkv = jnp.concatenate([params["wq"], params["wk"], params["wv"]],
                           axis=1).astype(bf16)              # (D, Dq + 2*Dkv)
    wo = params["wo"].astype(bf16).reshape(n_heads, hd, D)   # per-head slices
    w1 = params["w1"].astype(bf16)
    w2 = params["w2"].astype(bf16)
    w3 = params["w3"].astype(bf16)

    # rotate_half sign folded into sin once, outside all kernels
    sign = jnp.concatenate([-jnp.ones((hd // 2,), cos.dtype),
                            jnp.ones((hd // 2,), cos.dtype)])
    sin_signed = sin * sign
    use_roll = (hd % 128 == 0)      # pltpu.roll path at production head_dim

    vmem = _vmem_limit_bytes()

    def cparams(sems):
        return pltpu.CompilerParams(dimension_semantics=sems,
                                    vmem_limit_bytes=vmem)

    # ---- stage 1: attention_norm + fused QKV + QK-norm + rotary -------------
    qh, kh, vh = pl.pallas_call(
        functools.partial(_qkv_rope_kernel, n_heads=n_heads,
                          n_kv_heads=n_kv_heads, head_dim=hd, use_roll=use_roll),
        grid=(B, S // ts1),
        in_specs=[
            pl.BlockSpec((1, ts1, D), lambda b, si: (b, si, 0)),       # x
            pl.BlockSpec((ts1, hd), lambda b, si: (si, 0)),            # cos
            pl.BlockSpec((ts1, hd), lambda b, si: (si, 0)),            # sin (signed)
            _invariant_spec((1, D), lambda b, si: (0, 0)),             # attn_norm w
            _invariant_spec((D, Dtot), lambda b, si: (0, 0)),          # fused wqkv
            _invariant_spec((1, hd), lambda b, si: (0, 0)),            # q_norm w
            _invariant_spec((1, hd), lambda b, si: (0, 0)),            # k_norm w
        ],
        out_specs=(
            pl.BlockSpec((1, n_heads, ts1, hd), lambda b, si: (b, 0, si, 0)),
            pl.BlockSpec((1, n_kv_heads, ts1, hd), lambda b, si: (b, 0, si, 0)),
            pl.BlockSpec((1, n_kv_heads, ts1, hd), lambda b, si: (b, 0, si, 0)),
        ),
        out_shape=(
            jax.ShapeDtypeStruct((B, n_heads, S, hd), bf16),
            jax.ShapeDtypeStruct((B, n_kv_heads, S, hd), bf16),
            jax.ShapeDtypeStruct((B, n_kv_heads, S, hd), bf16),
        ),
        compiler_params=cparams(("parallel", "parallel")),
        cost_estimate=pl.CostEstimate(
            flops=2 * B * S * D * Dtot,
            transcendentals=0,
            bytes_accessed=x.dtype.itemsize * B * S * D + 2 * D * Dtot
                           + 2 * B * S * Dtot + 8 * S * hd),
    )(x, cos, sin_signed, params["attn_norm_w"], wqkv,
      params["q_norm_w"], params["k_norm_w"])

    # ---- stage 2: GQA-grouped flash attention (K/V streamed once per group) --
    nq = S // ta
    kv_tiles = B * G * (nq * (nq + 1)) // 2     # tiles actually DMA'd (causal)
    attn = pl.pallas_call(
        functools.partial(_flash_attn_kernel, n_rep=n_rep, tile_q=ta, tile_k=ta),
        grid=(B, G, nq, nq),
        in_specs=[
            pl.BlockSpec((1, n_rep, ta, hd),
                         lambda b, g, qi, ki: (b, g, qi, 0)),              # q group
            pl.BlockSpec((1, 1, ta, hd),                                   # k
                         lambda b, g, qi, ki: (b, g, jnp.minimum(ki, qi), 0)),
            pl.BlockSpec((1, 1, ta, hd),                                   # v
                         lambda b, g, qi, ki: (b, g, jnp.minimum(ki, qi), 0)),
        ],
        out_specs=pl.BlockSpec((1, n_rep, ta, hd),
                               lambda b, g, qi, ki: (b, g, qi, 0)),
        out_shape=jax.ShapeDtypeStruct((B, n_heads, S, hd), bf16),
        scratch_shapes=[
            pltpu.VMEM((n_rep * ta, 1), jnp.float32),    # running max
            pltpu.VMEM((n_rep * ta, 1), jnp.float32),    # running denominator
            pltpu.VMEM((n_rep * ta, hd), jnp.float32),   # output accumulator
        ],
        compiler_params=cparams(("parallel", "parallel", "parallel", "arbitrary")),
        cost_estimate=pl.CostEstimate(
            flops=2 * B * n_heads * S * S * hd,
            transcendentals=B * n_heads * S * S // 2,
            bytes_accessed=2 * B * S * Dq + 4 * kv_tiles * ta * hd
                           + 2 * B * S * Dq),
    )(qh, kh, vh)

    # ---- stage 3: un-fused output projection (head reduction) + residual -----
    h = pl.pallas_call(
        _wo_residual_kernel,
        grid=(B, S // ts3, n_heads),
        in_specs=[
            pl.BlockSpec((1, 1, ts3, hd), lambda b, r, h_: (b, h_, r, 0)),  # attn
            pl.BlockSpec((1, hd, D), lambda b, r, h_: (h_, 0, 0)),          # wo_h
            pl.BlockSpec((1, ts3, D), lambda b, r, h_: (b, r, 0)),          # x
        ],
        out_specs=pl.BlockSpec((1, ts3, D), lambda b, r, h_: (b, r, 0)),
        out_shape=jax.ShapeDtypeStruct((B, S, D), bf16),
        scratch_shapes=[pltpu.VMEM((ts3, D), jnp.float32)],
        compiler_params=cparams(("parallel", "parallel", "arbitrary")),
        cost_estimate=pl.CostEstimate(
            flops=2 * B * S * Dq * D,
            transcendentals=0,
            bytes_accessed=2 * B * S * Dq + x.dtype.itemsize * B * S * D
                           + (B * S // ts3) * 2 * Dq * D + 2 * B * S * D),
    )(attn, wo, x)

    # ---- stage 4: ffn_norm + F-tiled SwiGLU MLP + residual --------------------
    out = pl.pallas_call(
        _swiglu_mlp_kernel,
        grid=(R // ts4, F // tf),
        in_specs=[
            pl.BlockSpec((ts4, D), lambda r, fi: (r, 0)),          # h rows (bf16)
            _invariant_spec((1, D), lambda r, fi: (0, 0)),         # ffn_norm w
            pl.BlockSpec((D, tf), lambda r, fi: (0, fi)),          # w1 tile
            pl.BlockSpec((D, tf), lambda r, fi: (0, fi)),          # w3 tile
            pl.BlockSpec((tf, D), lambda r, fi: (fi, 0)),          # w2 tile
        ],
        out_specs=pl.BlockSpec((ts4, D), lambda r, fi: (r, 0)),
        out_shape=jax.ShapeDtypeStruct((R, D), x.dtype),
        scratch_shapes=[
            pltpu.VMEM((ts4, D), jnp.bfloat16),   # normalized rows (reused per F tile)
            pltpu.VMEM((ts4, D), jnp.float32),    # w2 output accumulator
        ],
        compiler_params=cparams(("parallel", "arbitrary")),
        cost_estimate=pl.CostEstimate(
            flops=6 * R * D * F,
            transcendentals=R * F,
            bytes_accessed=2 * R * D + x.dtype.itemsize * R * D
                           + (R // ts4) * 6 * D * F),
    )(h.reshape(R, D), params["ffn_norm_w"], w1, w3, w2)

    return out.reshape(B, S, D)


# ------------------------------ reference (pure JAX, f32) ---------------------
def transformer_block_ref(x, cos, sin, p, *, n_heads, n_kv_heads, head_dim):
    def one(xb):
        S, D = xb.shape
        n_rep = n_heads // n_kv_heads
        xn = _rmsnorm(xb, p["attn_norm_w"])
        q = (xn @ p["wq"]).reshape(S, n_heads, head_dim)
        k = (xn @ p["wk"]).reshape(S, n_kv_heads, head_dim)
        v = (xn @ p["wv"]).reshape(S, n_kv_heads, head_dim)
        q = _rmsnorm(q, p["q_norm_w"])
        k = _rmsnorm(k, p["k_norm_w"])
        c, s = cos[:, None, :], sin[:, None, :]
        q = q * c + _rotate_half(q) * s
        k = k * c + _rotate_half(k) * s
        k = jnp.repeat(k, n_rep, axis=1)
        v = jnp.repeat(v, n_rep, axis=1)
        sc = jnp.einsum("qhd,khd->hqk", q, k) / (head_dim ** 0.5)
        mask = jnp.tril(jnp.ones((S, S), bool))
        sc = jnp.where(mask[None], sc, NEG_INF)
        pr = jax.nn.softmax(sc, axis=-1)
        a = jnp.einsum("hqk,khd->qhd", pr, v).reshape(S, n_heads * head_dim)
        h = xb + a @ p["wo"]
        hn = _rmsnorm(h, p["ffn_norm_w"])
        ffn = (jax.nn.silu(hn @ p["w1"]) * (hn @ p["w3"])) @ p["w2"]
        return h + ffn
    return jax.vmap(one)(x)


# ------------------------------ main ------------------------------------------
if __name__ == "__main__":
    B, S, D = 2, 32, 32
    n_heads, n_kv_heads, head_dim = 4, 2, 16
    ffn_hidden = 256
    # small tiles so the multi-tile grids (q/k tiles, kv-groups, F tiles) are
    # all exercised at these toy shapes
    tile_seq, tile_attn, tile_rows, tile_f = 16, 16, 16, 128

    key = jax.random.PRNGKey(0)
    ks = jax.random.split(key, 8)

    def init(k, shape):
        return 0.02 * jax.random.normal(k, shape, dtype=jnp.float32)

    params = {
        "attn_norm_w": jnp.ones((1, D), jnp.float32),
        "ffn_norm_w":  jnp.ones((1, D), jnp.float32),
        "q_norm_w":    jnp.ones((1, head_dim), jnp.float32),
        "k_norm_w":    jnp.ones((1, head_dim), jnp.float32),
        "wq": init(ks[0], (D, n_heads * head_dim)),
        "wk": init(ks[1], (D, n_kv_heads * head_dim)),
        "wv": init(ks[2], (D, n_kv_heads * head_dim)),
        "wo": init(ks[3], (n_heads * head_dim, D)),
        "w1": init(ks[4], (D, ffn_hidden)),
        "w2": init(ks[5], (ffn_hidden, D)),
        "w3": init(ks[6], (D, ffn_hidden)),
    }

    x = jax.random.normal(ks[7], (B, S, D), dtype=jnp.float32)

    # rotary cos/sin (GPT-NeoX half-split convention), theta=10000
    inv_freq = 1.0 / (10000.0 ** (jnp.arange(0, head_dim, 2, dtype=jnp.float32)
                                  / head_dim))
    t = jnp.arange(S, dtype=jnp.float32)
    freqs = jnp.outer(t, inv_freq)
    emb = jnp.concatenate([freqs, freqs], axis=-1)
    cos, sin = jnp.cos(emb), jnp.sin(emb)

    out = transformer_block(x, cos, sin, params,
                            n_heads=n_heads, n_kv_heads=n_kv_heads,
                            head_dim=head_dim, tile_seq=tile_seq,
                            tile_attn=tile_attn, tile_rows=tile_rows,
                            tile_f=tile_f)
    out = jax.block_until_ready(out)

    ref = transformer_block_ref(x, cos, sin, params,
                                n_heads=n_heads, n_kv_heads=n_kv_heads,
                                head_dim=head_dim)
    np.testing.assert_allclose(np.asarray(out), np.asarray(ref),
                               rtol=2e-2, atol=2e-2)

    print("KERNEL_OK")
</pallas_src>

<mosaic_0001>
module attributes {stable_mosaic.version = 11 : i64} {
  func.func @_k(%arg0: i32, %arg1: memref<8x128xf32, #tpu.memory_space<vmem>>, %arg2: memref<8x128xf32, #tpu.memory_space<vmem>>, %arg3: memref<8x128xf32, #tpu.memory_space<vmem>>) attributes {dimension_semantics = [#tpu.dimension_semantics<arbitrary>], iteration_bounds = array<i64: 2>, scalar_prefetch = 0 : i64, scratch_operands = 0 : i64, tpu.core_type = #tpu.core_type<tc>, window_params = [{transform_indices = @transform_0, window_bounds = array<i64: 8, 128>}, {pipeline_mode = #tpu.pipeline_mode<synchronous>, transform_indices = @transform_1, window_bounds = array<i64: 8, 128>}, {transform_indices = @transform_2, window_bounds = array<i64: 8, 128>}]} {
    %c0 = arith.constant 0 : index
    %c0_0 = arith.constant 0 : index
    %0 = vector.load %arg1[%c0, %c0_0] : memref<8x128xf32, #tpu.memory_space<vmem>>, vector<8x128xf32>
    %c0_1 = arith.constant 0 : index
    %c0_2 = arith.constant 0 : index
    %1 = vector.load %arg2[%c0_1, %c0_2] : memref<8x128xf32, #tpu.memory_space<vmem>>, vector<8x128xf32>
    %2 = arith.addf %0, %1 : vector<8x128xf32>
    %c0_3 = arith.constant 0 : index
    %c0_4 = arith.constant 0 : index
    %3 = vector.load %arg3[%c0_3, %c0_4] : memref<8x128xf32, #tpu.memory_space<vmem>>, vector<8x128xf32>
    tpu.vector_store %arg3[%c0_3, %c0_4], %2 {strides = array<i32>} : memref<8x128xf32, #tpu.memory_space<vmem>>, vector<8x128xf32>,
    return
  }
  func.func @transform_0(%arg0: i32) -> (i32, i32) {
    %c0_i32 = arith.constant 0 : i32
    %c0_i32_0 = arith.constant 0 : i32
    return %arg0, %c0_i32 : i32, i32
  }
  func.func @transform_1(%arg0: i32) -> (i32, i32) {
    %c0_i32 = arith.constant 0 : i32
    %c0_i32_0 = arith.constant 0 : i32
    %c0_i32_1 = arith.constant 0 : i32
    return %c0_i32, %c0_i32_0 : i32, i32
  }
  func.func @transform_2(%arg0: i32) -> (i32, i32) {
    %c0_i32 = arith.constant 0 : i32
    %c0_i32_0 = arith.constant 0 : i32
    return %arg0, %c0_i32 : i32, i32
  }
}

module attributes {stable_mosaic.version = 11 : i64} {
  func.func @_qkv_rope_kernel(%arg0: i32, %arg1: i32, %arg2: memref<1x16x32xf32, #tpu.memory_space<vmem>>, %arg3: memref<16x16xf32, #tpu.memory_space<vmem>>, %arg4: memref<16x16xf32, #tpu.memory_space<vmem>>, %arg5: memref<1x32xf32, #tpu.memory_space<vmem>>, %arg6: memref<32x128xbf16, #tpu.memory_space<vmem>>, %arg7: memref<1x16xf32, #tpu.memory_space<vmem>>, %arg8: memref<1x16xf32, #tpu.memory_space<vmem>>, %arg9: memref<1x4x16x16xbf16, #tpu.memory_space<vmem>>, %arg10: memref<1x2x16x16xbf16, #tpu.memory_space<vmem>>, %arg11: memref<1x2x16x16xbf16, #tpu.memory_space<vmem>>) attributes {dimension_semantics = [#tpu.dimension_semantics<parallel>, #tpu.dimension_semantics<parallel>], iteration_bounds = array<i64: 2, 2>, scalar_prefetch = 0 : i64, scratch_operands = 0 : i64, tpu.core_type = #tpu.core_type<tc>, window_params = [{transform_indices = @transform_0, window_bounds = array<i64: 1, 16, 32>}, {transform_indices = @transform_1, window_bounds = array<i64: 16, 16>}, {transform_indices = @transform_2, window_bounds = array<i64: 16, 16>}, {pipeline_mode = #tpu.pipeline_mode<synchronous>, transform_indices = @transform_3, window_bounds = array<i64: 1, 32>}, {pipeline_mode = #tpu.pipeline_mode<synchronous>, transform_indices = @transform_4, window_bounds = array<i64: 32, 128>}, {pipeline_mode = #tpu.pipeline_mode<synchronous>, transform_indices = @transform_5, window_bounds = array<i64: 1, 16>}, {pipeline_mode = #tpu.pipeline_mode<synchronous>, transform_indices = @transform_6, window_bounds = array<i64: 1, 16>}, {transform_indices = @transform_7, window_bounds = array<i64: 1, 4, 16, 16>}, {transform_indices = @transform_8, window_bounds = array<i64: 1, 2, 16, 16>}, {transform_indices = @transform_9, window_bounds = array<i64: 1, 2, 16, 16>}]} {
    %c0 = arith.constant 0 : index
    %c0_0 = arith.constant 0 : index
    %c0_1 = arith.constant 0 : index
    %0 = vector.load %arg2[%c0, %c0_0, %c0_1] : memref<1x16x32xf32, #tpu.memory_space<vmem>>, vector<1x16x32xf32>
    %1 = vector.shape_cast %0 : vector<1x16x32xf32> to vector<16x32xf32>
    %c0_2 = arith.constant 0 : index
    %c0_3 = arith.constant 0 : index
    %2 = vector.load %arg5[%c0_2, %c0_3] : memref<1x32xf32, #tpu.memory_space<vmem>>, vector<1x32xf32>
    %3 = arith.mulf %1, %1 : vector<16x32xf32>
    %cst = arith.constant dense<0.000000e+00> : vector<16xf32>
    %4 = vector.multi_reduction <add>, %3, %cst [1] : vector<16x32xf32> to vector<16xf32>
    %5 = vector.shape_cast %4 : vector<16xf32> to vector<16x1xf32>
    %cst_4 = arith.constant 3.200000e+01 : f32
    %6 = vector.broadcast %cst_4 : f32 to vector<16x1xf32>
    %7 = arith.divf %5, %6 : vector<16x1xf32>
    %cst_5 = arith.constant 9.99999974E-6 : f32
    %8 = vector.broadcast %cst_5 : f32 to vector<16x1xf32>
    %9 = arith.addf %7, %8 : vector<16x1xf32>
    %10 = math.rsqrt %9 : vector<16x1xf32>
    %11 = vector.broadcast %10 : vector<16x1xf32> to vector<16x32xf32>
    %12 = arith.mulf %1, %11 : vector<16x32xf32>
    %13 = vector.broadcast %2 : vector<1x32xf32> to vector<16x32xf32>
    %14 = arith.mulf %12, %13 : vector<16x32xf32>
    %15 = arith.truncf %14 : vector<16x32xf32> to vector<16x32xbf16>
    %c0_6 = arith.constant 0 : index
    %c0_7 = arith.constant 0 : index
    %16 = vector.load %arg6[%c0_6, %c0_7] : memref<32x128xbf16, #tpu.memory_space<vmem>>, vector<32x128xbf16>
    %cst_8 = arith.constant dense<0.000000e+00> : vector<16x128xf32>
    %17 = tpu.matmul %15, %16, %cst_8 {dimension_numbers = #tpu.dot_dimension_numbers<[1], [0], [0], [1], [0, 0, 1, 1], [], []>} : vector<16x32xbf16>, vector<32x128xbf16>, vector<16x128xf32> -> vector<16x128xf32>
    %c0_9 = arith.constant 0 : index
    %c0_10 = arith.constant 0 : index
    %18 = vector.load %arg3[%c0_9, %c0_10] : memref<16x16xf32, #tpu.memory_space<vmem>>, vector<16x16xf32>
    %c0_11 = arith.constant 0 : index
    %c0_12 = arith.constant 0 : index
    %19 = vector.load %arg4[%c0_11, %c0_12] : memref<16x16xf32, #tpu.memory_space<vmem>>, vector<16x16xf32>
    %20 = vector.extract_strided_slice %17 {offsets = [0, 0], sizes = [16, 16], strides = [1, 1]} : vector<16x128xf32> to vector<16x16xf32>
    %c0_13 = arith.constant 0 : index
    %c0_14 = arith.constant 0 : index
    %21 = vector.load %arg7[%c0_13, %c0_14] : memref<1x16xf32, #tpu.memory_space<vmem>>, vector<1x16xf32>
    %22 = arith.mulf %20, %20 : vector<16x16xf32>
    %cst_15 = arith.constant dense<0.000000e+00> : vector<16xf32>
    %23 = vector.multi_reduction <add>, %22, %cst_15 [1] : vector<16x16xf32> to vector<16xf32>
    %24 = vector.shape_cast %23 : vector<16xf32> to vector<16x1xf32>
    %cst_16 = arith.constant 1.600000e+01 : f32
    %25 = vector.broadcast %cst_16 : f32 to vector<16x1xf32>
    %26 = arith.divf %24, %25 : vector<16x1xf32>
    %cst_17 = arith.constant 9.99999974E-6 : f32
    %27 = vector.broadcast %cst_17 : f32 to vector<16x1xf32>
    %28 = arith.addf %26, %27 : vector<16x1xf32>
    %29 = math.rsqrt %28 : vector<16x1xf32>
    %30 = vector.broadcast %29 : vector<16x1xf32> to vector<16x16xf32>
    %31 = arith.mulf %20, %30 : vector<16x16xf32>
    %32 = vector.broadcast %21 : vector<1x16xf32> to vector<16x16xf32>
    %33 = arith.mulf %31, %32 : vector<16x16xf32>
    %34 = vector.extract_strided_slice %33 {offsets = [0, 0], sizes = [16, 8], strides = [1, 1]} : vector<16x16xf32> to vector<16x8xf32>
    %35 = vector.extract_strided_slice %33 {offsets = [0, 8], sizes = [16, 8], strides = [1, 1]} : vector<16x16xf32> to vector<16x8xf32>
    %36 = vector.extract_strided_slice %18 {offsets = [0, 0], sizes = [16, 8], strides = [1, 1]} : vector<16x16xf32> to vector<16x8xf32>
    %37 = vector.extract_strided_slice %18 {offsets = [0, 8], sizes = [16, 8], strides = [1, 1]} : vector<16x16xf32> to vector<16x8xf32>
    %38 = vector.extract_strided_slice %19 {offsets = [0, 0], sizes = [16, 8], strides = [1, 1]} : vector<16x16xf32> to vector<16x8xf32>
    %39 = vector.extract_strided_slice %19 {offsets = [0, 8], sizes = [16, 8], strides = [1, 1]} : vector<16x16xf32> to vector<16x8xf32>
    %40 = arith.mulf %34, %36 : vector<16x8xf32>
    %41 = arith.mulf %35, %38 : vector<16x8xf32>
    %42 = arith.addf %40, %41 : vector<16x8xf32>
    %43 = arith.mulf %35, %37 : vector<16x8xf32>
    %44 = arith.mulf %34, %39 : vector<16x8xf32>
    %45 = arith.addf %43, %44 : vector<16x8xf32>
    %46 = tpu.concatenate %42, %45 in 1 : vector<16x8xf32>, vector<16x8xf32> -> vector<16x16xf32>
    %cst_18 = arith.constant 2.500000e-01 : f32
    %47 = vector.broadcast %cst_18 : f32 to vector<16x16xf32>
    %48 = arith.mulf %46, %47 : vector<16x16xf32>
    %49 = arith.truncf %48 : vector<16x16xf32> to vector<16x16xbf16>
    %50 = vector.extract_strided_slice %17 {offsets = [0, 16], sizes = [16, 16], strides = [1, 1]} : vector<16x128xf32> to vector<16x16xf32>
    %c0_19 = arith.constant 0 : index
    %c0_20 = arith.constant 0 : index
    %51 = vector.load %arg7[%c0_19, %c0_20] : memref<1x16xf32, #tpu.memory_space<vmem>>, vector<1x16xf32>
    %52 = arith.mulf %50, %50 : vector<16x16xf32>
    %cst_21 = arith.constant dense<0.000000e+00> : vector<16xf32>
    %53 = vector.multi_reduction <add>, %52, %cst_21 [1] : vector<16x16xf32> to vector<16xf32>
    %54 = vector.shape_cast %53 : vector<16xf32> to vector<16x1xf32>
    %cst_22 = arith.constant 1.600000e+01 : f32
    %55 = vector.broadcast %cst_22 : f32 to vector<16x1xf32>
    %56 = arith.divf %54, %55 : vector<16x1xf32>
    %cst_23 = arith.constant 9.99999974E-6 : f32
    %57 = vector.broadcast %cst_23 : f32 to vector<16x1xf32>
    %58 = arith.addf %56, %57 : vector<16x1xf32>
    %59 = math.rsqrt %58 : vector<16x1xf32>
    %60 = vector.broadcast %59 : vector<16x1xf32> to vector<16x16xf32>
    %61 = arith.mulf %50, %60 : vector<16x16xf32>
    %62 = vector.broadcast %51 : vector<1x16xf32> to vector<16x16xf32>
    %63 = arith.mulf %61, %62 : vector<16x16xf32>
    %64 = vector.extract_strided_slice %63 {offsets = [0, 0], sizes = [16, 8], strides = [1, 1]} : vector<16x16xf32> to vector<16x8xf32>
    %65 = vector.extract_strided_slice %63 {offsets = [0, 8], sizes = [16, 8], strides = [1, 1]} : vector<16x16xf32> to vector<16x8xf32>
    %66 = vector.extract_strided_slice %18 {offsets = [0, 0], sizes = [16, 8], strides = [1, 1]} : vector<16x16xf32> to vector<16x8xf32>
    %67 = vector.extract_strided_slice %18 {offsets = [0, 8], sizes = [16, 8], strides = [1, 1]} : vector<16x16xf32> to vector<16x8xf32>
    %68 = vector.extract_strided_slice %19 {offsets = [0, 0], sizes = [16, 8], strides = [1, 1]} : vector<16x16xf32> to vector<16x8xf32>
    %69 = vector.extract_strided_slice %19 {offsets = [0, 8], sizes = [16, 8], strides = [1, 1]} : vector<16x16xf32> to vector<16x8xf32>
    %70 = arith.mulf %64, %66 : vector<16x8xf32>
    %71 = arith.mulf %65, %68 : vector<16x8xf32>
    %72 = arith.addf %70, %71 : vector<16x8xf32>
    %73 = arith.mulf %65, %67 : vector<16x8xf32>
    %74 = arith.mulf %64, %69 : vector<16x8xf32>
    %75 = arith.addf %73, %74 : vector<16x8xf32>
    %76 = tpu.concatenate %72, %75 in 1 : vector<16x8xf32>, vector<16x8xf32> -> vector<16x16xf32>
    %cst_24 = arith.constant 2.500000e-01 : f32
    %77 = vector.broadcast %cst_24 : f32 to vector<16x16xf32>
    %78 = arith.mulf %76, %77 : vector<16x16xf32>
    %79 = arith.truncf %78 : vector<16x16xf32> to vector<16x16xbf16>
    %80 = vector.extract_strided_slice %17 {offsets = [0, 32], sizes = [16, 16], strides = [1, 1]} : vector<16x128xf32> to vector<16x16xf32>
    %c0_25 = arith.constant 0 : index
    %c0_26 = arith.constant 0 : index
    %81 = vector.load %arg7[%c0_25, %c0_26] : memref<1x16xf32, #tpu.memory_space<vmem>>, vector<1x16xf32>
    %82 = arith.mulf %80, %80 : vector<16x16xf32>
    %cst_27 = arith.constant dense<0.000000e+00> : vector<16xf32>
    %83 = vector.multi_reduction <add>, %82, %cst_27 [1] : vector<16x16xf32> to vector<16xf32>
    %84 = vector.shape_cast %83 : vector<16xf32> to vector<16x1xf32>
    %cst_28 = arith.constant 1.600000e+01 : f32
    %85 = vector.broadcast %cst_28 : f32 to vector<16x1xf32>
    %86 = arith.divf %84, %85 : vector<16x1xf32>
    %cst_29 = arith.constant 9.99999974E-6 : f32
    %87 = vector.broadcast %cst_29 : f32 to vector<16x1xf32>
    %88 = arith.addf %86, %87 : vector<16x1xf32>
    %89 = math.rsqrt %88 : vector<16x1xf32>
    %90 = vector.broadcast %89 : vector<16x1xf32> to vector<16x16xf32>
    %91 = arith.mulf %80, %90 : vector<16x16xf32>
    %92 = vector.broadcast %81 : vector<1x16xf32> to vector<16x16xf32>
    %93 = arith.mulf %91, %92 : vector<16x16xf32>
    %94 = vector.extract_strided_slice %93 {offsets = [0, 0], sizes = [16, 8], strides = [1, 1]} : vector<16x16xf32> to vector<16x8xf32>
    %95 = vector.extract_strided_slice %93 {offsets = [0, 8], sizes = [16, 8], strides = [1, 1]} : vector<16x16xf32> to vector<16x8xf32>
    %96 = vector.extract_strided_slice %18 {offsets = [0, 0], sizes = [16, 8], strides = [1, 1]} : vector<16x16xf32> to vector<16x8xf32>
    %97 = vector.extract_strided_slice %18 {offsets = [0, 8], sizes = [16, 8], strides = [1, 1]} : vector<16x16xf32> to vector<16x8xf32>
    %98 = vector.extract_strided_slice %19 {offsets = [0, 0], sizes = [16, 8], strides = [1, 1]} : vector<16x16xf32> to vector<16x8xf32>
    %99 = vector.extract_strided_slice %19 {offsets = [0, 8], sizes = [16, 8], strides = [1, 1]} : vector<16x16xf32> to vector<16x8xf32>
    %100 = arith.mulf %94, %96 : vector<16x8xf32>
    %101 = arith.mulf %95, %98 : vector<16x8xf32>
    %102 = arith.addf %100, %101 : vector<16x8xf32>
    %103 = arith.mulf %95, %97 : vector<16x8xf32>
    %104 = arith.mulf %94, %99 : vector<16x8xf32>
    %105 = arith.addf %103, %104 : vector<16x8xf32>
    %106 = tpu.concatenate %102, %105 in 1 : vector<16x8xf32>, vector<16x8xf32> -> vector<16x16xf32>
    %cst_30 = arith.constant 2.500000e-01 : f32
    %107 = vector.broadcast %cst_30 : f32 to vector<16x16xf32>
    %108 = arith.mulf %106, %107 : vector<16x16xf32>
    %109 = arith.truncf %108 : vector<16x16xf32> to vector<16x16xbf16>
    %110 = vector.extract_strided_slice %17 {offsets = [0, 48], sizes = [16, 16], strides = [1, 1]} : vector<16x128xf32> to vector<16x16xf32>
    %c0_31 = arith.constant 0 : index
    %c0_32 = arith.constant 0 : index
    %111 = vector.load %arg7[%c0_31, %c0_32] : memref<1x16xf32, #tpu.memory_space<vmem>>, vector<1x16xf32>
    %112 = arith.mulf %110, %110 : vector<16x16xf32>
    %cst_33 = arith.constant dense<0.000000e+00> : vector<16xf32>
    %113 = vector.multi_reduction <add>, %112, %cst_33 [1] : vector<16x16xf32> to vector<16xf32>
    %114 = vector.shape_cast %113 : vector<16xf32> to vector<16x1xf32>
    %cst_34 = arith.constant 1.600000e+01 : f32
    %115 = vector.broadcast %cst_34 : f32 to vector<16x1xf32>
    %116 = arith.divf %114, %115 : vector<16x1xf32>
    %cst_35 = arith.constant 9.99999974E-6 : f32
    %117 = vector.broadcast %cst_35 : f32 to vector<16x1xf32>
    %118 = arith.addf %116, %117 : vector<16x1xf32>
    %119 = math.rsqrt %118 : vector<16x1xf32>
    %120 = vector.broadcast %119 : vector<16x1xf32> to vector<16x16xf32>
    %121 = arith.mulf %110, %120 : vector<16x16xf32>
    %122 = vector.broadcast %111 : vector<1x16xf32> to vector<16x16xf32>
    %123 = arith.mulf %121, %122 : vector<16x16xf32>
    %124 = vector.extract_strided_slice %123 {offsets = [0, 0], sizes = [16, 8], strides = [1, 1]} : vector<16x16xf32> to vector<16x8xf32>
    %125 = vector.extract_strided_slice %123 {offsets = [0, 8], sizes = [16, 8], strides = [1, 1]} : vector<16x16xf32> to vector<16x8xf32>
    %126 = vector.extract_strided_slice %18 {offsets = [0, 0], sizes = [16, 8], strides = [1, 1]} : vector<16x16xf32> to vector<16x8xf32>
    %127 = vector.extract_strided_slice %18 {offsets = [0, 8], sizes = [16, 8], strides = [1, 1]} : vector<16x16xf32> to vector<16x8xf32>
    %128 = vector.extract_strided_slice %19 {offsets = [0, 0], sizes = [16, 8], strides = [1, 1]} : vector<16x16xf32> to vector<16x8xf32>
    %129 = vector.extract_strided_slice %19 {offsets = [0, 8], sizes = [16, 8], strides = [1, 1]} : vector<16x16xf32> to vector<16x8xf32>
    %130 = arith.mulf %124, %126 : vector<16x8xf32>
    %131 = arith.mulf %125, %128 : vector<16x8xf32>
    %132 = arith.addf %130, %131 : vector<16x8xf32>
    %133 = arith.mulf %125, %127 : vector<16x8xf32>
    %134 = arith.mulf %124, %129 : vector<16x8xf32>
    %135 = arith.addf %133, %134 : vector<16x8xf32>
    %136 = tpu.concatenate %132, %135 in 1 : vector<16x8xf32>, vector<16x8xf32> -> vector<16x16xf32>
    %cst_36 = arith.constant 2.500000e-01 : f32
    %137 = vector.broadcast %cst_36 : f32 to vector<16x16xf32>
    %138 = arith.mulf %136, %137 : vector<16x16xf32>
    %139 = arith.truncf %138 : vector<16x16xf32> to vector<16x16xbf16>
    %140 = vector.shape_cast %49 : vector<16x16xbf16> to vector<1x16x16xbf16>
    %141 = vector.shape_cast %79 : vector<16x16xbf16> to vector<1x16x16xbf16>
    %142 = vector.shape_cast %109 : vector<16x16xbf16> to vector<1x16x16xbf16>
    %143 = vector.shape_cast %139 : vector<16x16xbf16> to vector<1x16x16xbf16>
    %144 = tpu.concatenate %140, %141, %142, %143 in 0 : vector<1x16x16xbf16>, vector<1x16x16xbf16>, vector<1x16x16xbf16>, vector<1x16x16xbf16> -> vector<4x16x16xbf16>
    %c0_37 = arith.constant 0 : index
    %c0_38 = arith.constant 0 : index
    %c0_39 = arith.constant 0 : index
    %c0_40 = arith.constant 0 : index
    %145 = vector.load %arg9[%c0_37, %c0_38, %c0_39, %c0_40] : memref<1x4x16x16xbf16, #tpu.memory_space<vmem>>, vector<1x4x16x16xbf16>
    %146 = vector.shape_cast %145 : vector<1x4x16x16xbf16> to vector<4x16x16xbf16>
    %147 = vector.shape_cast %144 : vector<4x16x16xbf16> to vector<1x4x16x16xbf16>
    tpu.vector_store %arg9[%c0_37, %c0_38, %c0_39, %c0_40], %147 {strides = array<i32>} : memref<1x4x16x16xbf16, #tpu.memory_space<vmem>>, vector<1x4x16x16xbf16>,
    %148 = vector.extract_strided_slice %17 {offsets = [0, 64], sizes = [16, 16], strides = [1, 1]} : vector<16x128xf32> to vector<16x16xf32>
    %c0_41 = arith.constant 0 : index
    %c0_42 = arith.constant 0 : index
    %149 = vector.load %arg8[%c0_41, %c0_42] : memref<1x16xf32, #tpu.memory_space<vmem>>, vector<1x16xf32>
    %150 = arith.mulf %148, %148 : vector<16x16xf32>
    %cst_43 = arith.constant dense<0.000000e+00> : vector<16xf32>
    %151 = vector.multi_reduction <add>, %150, %cst_43 [1] : vector<16x16xf32> to vector<16xf32>
    %152 = vector.shape_cast %151 : vector<16xf32> to vector<16x1xf32>
    %cst_44 = arith.constant 1.600000e+01 : f32
    %153 = vector.broadcast %cst_44 : f32 to vector<16x1xf32>
    %154 = arith.divf %152, %153 : vector<16x1xf32>
    %cst_45 = arith.constant 9.99999974E-6 : f32
    %155 = vector.broadcast %cst_45 : f32 to vector<16x1xf32>
    %156 = arith.addf %154, %155 : vector<16x1xf32>
    %157 = math.rsqrt %156 : vector<16x1xf32>
    %158 = vector.broadcast %157 : vector<16x1xf32> to vector<16x16xf32>
    %159 = arith.mulf %148, %158 : vector<16x16xf32>
    %160 = vector.broadcast %149 : vector<1x16xf32> to vector<16x16xf32>
    %161 = arith.mulf %159, %160 : vector<16x16xf32>
    %162 = vector.extract_strided_slice %161 {offsets = [0, 0], sizes = [16, 8], strides = [1, 1]} : vector<16x16xf32> to vector<16x8xf32>
    %163 = vector.extract_strided_slice %161 {offsets = [0, 8], sizes = [16, 8], strides = [1, 1]} : vector<16x16xf32> to vector<16x8xf32>
    %164 = vector.extract_strided_slice %18 {offsets = [0, 0], sizes = [16, 8], strides = [1, 1]} : vector<16x16xf32> to vector<16x8xf32>
    %165 = vector.extract_strided_slice %18 {offsets = [0, 8], sizes = [16, 8], strides = [1, 1]} : vector<16x16xf32> to vector<16x8xf32>
    %166 = vector.extract_strided_slice %19 {offsets = [0, 0], sizes = [16, 8], strides = [1, 1]} : vector<16x16xf32> to vector<16x8xf32>
    %167 = vector.extract_strided_slice %19 {offsets = [0, 8], sizes = [16, 8], strides = [1, 1]} : vector<16x16xf32> to vector<16x8xf32>
    %168 = arith.mulf %162, %164 : vector<16x8xf32>
    %169 = arith.mulf %163, %166 : vector<16x8xf32>
    %170 = arith.addf %168, %169 : vector<16x8xf32>
    %171 = arith.mulf %163, %165 : vector<16x8xf32>
    %172 = arith.mulf %162, %167 : vector<16x8xf32>
    %173 = arith.addf %171, %172 : vector<16x8xf32>
    %174 = tpu.concatenate %170, %173 in 1 : vector<16x8xf32>, vector<16x8xf32> -> vector<16x16xf32>
    %175 = arith.truncf %174 : vector<16x16xf32> to vector<16x16xbf16>
    %176 = vector.extract_strided_slice %17 {offsets = [0, 96], sizes = [16, 16], strides = [1, 1]} : vector<16x128xf32> to vector<16x16xf32>
    %177 = arith.truncf %176 : vector<16x16xf32> to vector<16x16xbf16>
    %178 = vector.extract_strided_slice %17 {offsets = [0, 80], sizes = [16, 16], strides = [1, 1]} : vector<16x128xf32> to vector<16x16xf32>
    %c0_46 = arith.constant 0 : index
    %c0_47 = arith.constant 0 : index
    %179 = vector.load %arg8[%c0_46, %c0_47] : memref<1x16xf32, #tpu.memory_space<vmem>>, vector<1x16xf32>
    %180 = arith.mulf %178, %178 : vector<16x16xf32>
    %cst_48 = arith.constant dense<0.000000e+00> : vector<16xf32>
    %181 = vector.multi_reduction <add>, %180, %cst_48 [1] : vector<16x16xf32> to vector<16xf32>
    %182 = vector.shape_cast %181 : vector<16xf32> to vector<16x1xf32>
    %cst_49 = arith.constant 1.600000e+01 : f32
    %183 = vector.broadcast %cst_49 : f32 to vector<16x1xf32>
    %184 = arith.divf %182, %183 : vector<16x1xf32>
    %cst_50 = arith.constant 9.99999974E-6 : f32
    %185 = vector.broadcast %cst_50 : f32 to vector<16x1xf32>
    %186 = arith.addf %184, %185 : vector<16x1xf32>
    %187 = math.rsqrt %186 : vector<16x1xf32>
    %188 = vector.broadcast %187 : vector<16x1xf32> to vector<16x16xf32>
    %189 = arith.mulf %178, %188 : vector<16x16xf32>
    %190 = vector.broadcast %179 : vector<1x16xf32> to vector<16x16xf32>
    %191 = arith.mulf %189, %190 : vector<16x16xf32>
    %192 = vector.extract_strided_slice %191 {offsets = [0, 0], sizes = [16, 8], strides = [1, 1]} : vector<16x16xf32> to vector<16x8xf32>
    %193 = vector.extract_strided_slice %191 {offsets = [0, 8], sizes = [16, 8], strides = [1, 1]} : vector<16x16xf32> to vector<16x8xf32>
    %194 = vector.extract_strided_slice %18 {offsets = [0, 0], sizes = [16, 8], strides = [1, 1]} : vector<16x16xf32> to vector<16x8xf32>
    %195 = vector.extract_strided_slice %18 {offsets = [0, 8], sizes = [16, 8], strides = [1, 1]} : vector<16x16xf32> to vector<16x8xf32>
    %196 = vector.extract_strided_slice %19 {offsets = [0, 0], sizes = [16, 8], strides = [1, 1]} : vector<16x16xf32> to vector<16x8xf32>
    %197 = vector.extract_strided_slice %19 {offsets = [0, 8], sizes = [16, 8], strides = [1, 1]} : vector<16x16xf32> to vector<16x8xf32>
    %198 = arith.mulf %192, %194 : vector<16x8xf32>
    %199 = arith.mulf %193, %196 : vector<16x8xf32>
    %200 = arith.addf %198, %199 : vector<16x8xf32>
    %201 = arith.mulf %193, %195 : vector<16x8xf32>
    %202 = arith.mulf %192, %197 : vector<16x8xf32>
    %203 = arith.addf %201, %202 : vector<16x8xf32>
    %204 = tpu.concatenate %200, %203 in 1 : vector<16x8xf32>, vector<16x8xf32> -> vector<16x16xf32>
    %205 = arith.truncf %204 : vector<16x16xf32> to vector<16x16xbf16>
    %206 = vector.extract_strided_slice %17 {offsets = [0, 112], sizes = [16, 16], strides = [1, 1]} : vector<16x128xf32> to vector<16x16xf32>
    %207 = arith.truncf %206 : vector<16x16xf32> to vector<16x16xbf16>
    %208 = vector.shape_cast %175 : vector<16x16xbf16> to vector<1x16x16xbf16>
    %209 = vector.shape_cast %205 : vector<16x16xbf16> to vector<1x16x16xbf16>
    %210 = tpu.concatenate %208, %209 in 0 : vector<1x16x16xbf16>, vector<1x16x16xbf16> -> vector<2x16x16xbf16>
    %c0_51 = arith.constant 0 : index
    %c0_52 = arith.constant 0 : index
    %c0_53 = arith.constant 0 : index
    %c0_54 = arith.constant 0 : index
    %211 = vector.load %arg10[%c0_51, %c0_52, %c0_53, %c0_54] : memref<1x2x16x16xbf16, #tpu.memory_space<vmem>>, vector<1x2x16x16xbf16>
    %212 = vector.shape_cast %211 : vector<1x2x16x16xbf16> to vector<2x16x16xbf16>
    %213 = vector.shape_cast %210 : vector<2x16x16xbf16> to vector<1x2x16x16xbf16>
    tpu.vector_store %arg10[%c0_51, %c0_52, %c0_53, %c0_54], %213 {strides = array<i32>} : memref<1x2x16x16xbf16, #tpu.memory_space<vmem>>, vector<1x2x16x16xbf16>,
    %214 = vector.shape_cast %177 : vector<16x16xbf16> to vector<1x16x16xbf16>
    %215 = vector.shape_cast %207 : vector<16x16xbf16> to vector<1x16x16xbf16>
    %216 = tpu.concatenate %214, %215 in 0 : vector<1x16x16xbf16>, vector<1x16x16xbf16> -> vector<2x16x16xbf16>
    %c0_55 = arith.constant 0 : index
    %c0_56 = arith.constant 0 : index
    %c0_57 = arith.constant 0 : index
    %c0_58 = arith.constant 0 : index
    %217 = vector.load %arg11[%c0_55, %c0_56, %c0_57, %c0_58] : memref<1x2x16x16xbf16, #tpu.memory_space<vmem>>, vector<1x2x16x16xbf16>
    %218 = vector.shape_cast %217 : vector<1x2x16x16xbf16> to vector<2x16x16xbf16>
    %219 = vector.shape_cast %216 : vector<2x16x16xbf16> to vector<1x2x16x16xbf16>
    tpu.vector_store %arg11[%c0_55, %c0_56, %c0_57, %c0_58], %219 {strides = array<i32>} : memref<1x2x16x16xbf16, #tpu.memory_space<vmem>>, vector<1x2x16x16xbf16>,
    return
  }
  func.func @transform_0(%arg0: i32, %arg1: i32) -> (i32, i32, i32) {
    %c0_i32 = arith.constant 0 : i32
    %c0_i32_0 = arith.constant 0 : i32
    return %arg0, %arg1, %c0_i32 : i32, i32, i32
  }
  func.func @transform_1(%arg0: i32, %arg1: i32) -> (i32, i32) {
    %c0_i32 = arith.constant 0 : i32
    %c0_i32_0 = arith.constant 0 : i32
    return %arg1, %c0_i32 : i32, i32
  }
  func.func @transform_2(%arg0: i32, %arg1: i32) -> (i32, i32) {
    %c0_i32 = arith.constant 0 : i32
    %c0_i32_0 = arith.constant 0 : i32
    return %arg1, %c0_i32 : i32, i32
  }
  func.func @transform_3(%arg0: i32, %arg1: i32) -> (i32, i32) {
    %c0_i32 = arith.constant 0 : i32
    %c0_i32_0 = arith.constant 0 : i32
    %c0_i32_1 = arith.constant 0 : i32
    return %c0_i32, %c0_i32_0 : i32, i32
  }
  func.func @transform_4(%arg0: i32, %arg1: i32) -> (i32, i32) {
    %c0_i32 = arith.constant 0 : i32
    %c0_i32_0 = arith.constant 0 : i32
    %c0_i32_1 = arith.constant 0 : i32
    return %c0_i32, %c0_i32_0 : i32, i32
  }
  func.func @transform_5(%arg0: i32, %arg1: i32) -> (i32, i32) {
    %c0_i32 = arith.constant 0 : i32
    %c0_i32_0 = arith.constant 0 : i32
    %c0_i32_1 = arith.constant 0 : i32
    return %c0_i32, %c0_i32_0 : i32, i32
  }
  func.func @transform_6(%arg0: i32, %arg1: i32) -> (i32, i32) {
    %c0_i32 = arith.constant 0 : i32
    %c0_i32_0 = arith.constant 0 : i32
    %c0_i32_1 = arith.constant 0 : i32
    return %c0_i32, %c0_i32_0 : i32, i32
  }
  func.func @transform_7(%arg0: i32, %arg1: i32) -> (i32, i32, i32, i32) {
    %c0_i32 = arith.constant 0 : i32
    %c0_i32_0 = arith.constant 0 : i32
    %c0_i32_1 = arith.constant 0 : i32
    return %arg0, %c0_i32, %arg1, %c0_i32_0 : i32, i32, i32, i32
  }
  func.func @transform_8(%arg0: i32, %arg1: i32) -> (i32, i32, i32, i32) {
    %c0_i32 = arith.constant 0 : i32
    %c0_i32_0 = arith.constant 0 : i32
    %c0_i32_1 = arith.constant 0 : i32
    return %arg0, %c0_i32, %arg1, %c0_i32_0 : i32, i32, i32, i32
  }
  func.func @transform_9(%arg0: i32, %arg1: i32) -> (i32, i32, i32, i32) {
    %c0_i32 = arith.constant 0 : i32
    %c0_i32_0 = arith.constant 0 : i32
    %c0_i32_1 = arith.constant 0 : i32
    return %arg0, %c0_i32, %arg1, %c0_i32_0 : i32, i32, i32, i32
  }
}

</mosaic_0001>

<llo_original>
// kernel: tpu_custom_call.1
$region0: #{tpu_custom_call.1}
  #allocation0 [shape = 'u32[]', space=smem, size = 0x4, offset = 0x4, fixed_abs, tag = 'smem constant byte address 0x4 - core index']
  #allocation1 [shape = 'u32[144,128]{1,0:T(1,128)}', space=vmem, size = 0x12000, scoped, tag = 'internal scratch']
  %s0 = inlined_call_operand.hbm [shape: f32[16,128], index: 0, kind: input, shape index: {}]
  %s1 = inlined_call_operand.hbm [shape: f32[8,128], index: 1, kind: input, shape index: {}]
  %s2 = inlined_call_operand.hbm [shape: f32[16,128], index: 2, kind: output, shape index: {}]
  %s3 = sld [smem:[#allocation0]]
  $region49: #{tpu_custom_call.1} parent=0
    _
  %s5 = ssub.s32 1, %s3
  %s6 = scalar_select 0, %s5, %s3
  $region1: #{tpu_custom_call.1} parent=0
    #allocation2 [shape = 'u8[8192]{0}', space=vmem, size = 0x2000, scoped, tag = 'input window, operand 0']
    #allocation3 [shape = 's32[2]{0}', space=sflag, size = 0x8, scoped, tag = 'scoped memory for tpu_custom_call.1']
    #allocation4 [shape = 's32[2]{0}', space=sflag, size = 0x8, scoped, tag = 'scoped memory for tpu_custom_call.1']
    #allocation5 [shape = 'u8[4096]{0}', space=vmem, size = 0x1000, scoped, tag = 'input window, operand 1, single buffered']
    #allocation6 [shape = 's32[1]{0}', space=sflag, size = 0x4, scoped, tag = 'scoped memory for tpu_custom_call.1']
    #allocation7 [shape = 'u8[8192]{0}', space=vmem, size = 0x2000, scoped, tag = 'output window, operand 0']
    %7 = vsyncpa [#allocation3], 0
    %s8 = scalar_lea.sflag [#allocation3], 1
    %9 = vsyncpa %s8, 0
    %10 = vsyncpa [#allocation6], 0
    %11 = vsyncpa [#allocation4], 0
    %s12 = scalar_lea.sflag [#allocation4], 1
    %13 = vsyncpa %s12, 0
    loop: start=0, step=1, limit=4
    $region2: #{tpu_custom_call.1} parent=1 // loop_pre_header
      _
    $region3: #{tpu_custom_call.1} parent=1 // loop_header
      %s15 = sphi 0, %s19
      %p16 = scmp.ge.s32.totalorder %s15, 4
      %s25 = sphi 0, %s27
      %s28 = sphi 0, %s25
      %s29 = sphi 0, %s28
      %s45 = sphi 0, %s29
      %s49 = sphi 0, %s49
      %s51 = sphi 0, %s49
      %s52 = sphi 0, %s51
      %s66 = sphi 0, %s52
      %s72 = sphi 0, %s74
      %s75 = sphi 0, %s72
      %s76 = sphi 0, %s75
      %s92 = sphi 0, %s76
    $region4: #{tpu_custom_call.1} parent=1 // loop_header_branch
      %18 = sbr.rel (%p16) target = $region8
    $region5: #{tpu_custom_call.1} parent=1 // loop_body
      %s20 = ssub.s32 %s15, 1
      %s21 = ssub.s32 %s15, 2
      %s22 = sadd.s32 %s15, 1
      %s23 = ssub.s32 %s15, %s22
      %p24 = scmp.eq.s32.totalorder %s23, 0
      %s26 = sadd.s32 %s25, 1
      %s27 = scalar_select %p24, %s25, %s26
      %p30 = pneg %p24
      %p31 = scmp.eq.s32.totalorder %s15, 1
      %p32 = por %p30, %p31
      %p33 = scmp.ne.s32.totalorder %s25, %s28
      %p34 = scmp.eq.s32.totalorder %s15, 0
      %p35 = por %p33, %p34
      %p36 = scmp.ne.s32.totalorder %s25, %s28
      %p37 = scmp.eq.s32.totalorder %s20, 1
      %p38 = por %p36, %p37
      %p39 = scmp.ne.s32.totalorder %s28, %s29
      %p40 = scmp.eq.s32.totalorder %s20, 0
      %p41 = por %p39, %p40
      %p42 = scmp.ne.s32.totalorder %s28, %s29
      %p43 = scmp.eq.s32.totalorder %s21, 1
      %p44 = por %p42, %p43
      %p46 = scmp.ne.s32.totalorder %s29, %s45
      %p47 = scmp.eq.s32.totalorder %s21, 0
      %p48 = por %p46, %p47
      %s50 = sadd.s32 %s49, 1
      %p53 = scmp.eq.s32.totalorder %s15, 1
      %p54 = scmp.ne.s32.totalorder %s49, %s51
      %p55 = scmp.eq.s32.totalorder %s15, 0
      %p56 = por %p54, %p55
      %p57 = scmp.ne.s32.totalorder %s49, %s51
      %p58 = scmp.eq.s32.totalorder %s20, 1
      %p59 = por %p57, %p58
      %p60 = scmp.ne.s32.totalorder %s51, %s52
      %p61 = scmp.eq.s32.totalorder %s20, 0
      %p62 = por %p60, %p61
      %p63 = scmp.ne.s32.totalorder %s51, %s52
      %p64 = scmp.eq.s32.totalorder %s21, 1
      %p65 = por %p63, %p64
      %p67 = scmp.ne.s32.totalorder %s52, %s66
      %p68 = scmp.eq.s32.totalorder %s21, 0
      %p69 = por %p67, %p68
      %s70 = ssub.s32 %s15, %s22
      %p71 = scmp.eq.s32.totalorder %s70, 0
      %s73 = sadd.s32 %s72, 1
      %s74 = scalar_select %p71, %s72, %s73
      %p77 = pneg %p71
      %p78 = scmp.eq.s32.totalorder %s15, 1
      %p79 = por %p77, %p78
      %p80 = scmp.ne.s32.totalorder %s72, %s75
      %p81 = scmp.eq.s32.totalorder %s15, 0
      %p82 = por %p80, %p81
      %p83 = scmp.ne.s32.totalorder %s72, %s75
      %p84 = scmp.eq.s32.totalorder %s20, 1
      %p85 = por %p83, %p84
      %p86 = scmp.ne.s32.totalorder %s75, %s76
      %p87 = scmp.eq.s32.totalorder %s20, 0
      %p88 = por %p86, %p87
      %p89 = scmp.ne.s32.totalorder %s75, %s76
      %p90 = scmp.eq.s32.totalorder %s21, 1
      %p91 = por %p89, %p90
      %p93 = scmp.ne.s32.totalorder %s76, %s92
      %p94 = scmp.eq.s32.totalorder %s21, 0
      %p95 = por %p93, %p94
      %p96 = scmp.le.s32.totalorder 1, %s15
      %p97 = scmp.lt.s32.totalorder %s15, 3
      %p98 = pnand %p96, %p97
      %p99 = pneg %p98
      // Predicated region
      $region9: #{tpu_custom_call.1} parent=5 // pred_check
        _
      $region10: #{tpu_custom_call.1} parent=5 // pred_check_branch
        %101 = sbr.rel (%p98) target = $region12
      $region11: #{tpu_custom_call.1} parent=5 // pred_region
        %s102 = ssub.s32 %s15, 1
        // Predicated region
        $region13: #{tpu_custom_call.1} parent=11 // pred_check
          %p103 = pneg %p62
        $region14: #{tpu_custom_call.1} parent=11 // pred_check_branch
          %105 = sbr.rel (%p103) target = $region16
        $region15: #{tpu_custom_call.1} parent=11 // pred_region
          %s107 = ssub.s32 128, 128
          %108 = vsyncadd [#allocation6], %s107
          %s110 = sshll.u32 [#allocation5], 4
          %s111 = int_to_ptr.vmem [resolvable:$true] %s110
          %113 = dma.hbm_to_vmem [thread:$0]  %s1, 128, %s111, [#allocation6]
        $region16: #{tpu_custom_call.1} parent=11 // pred_fallthru
          _
      $region12: #{tpu_custom_call.1} parent=5 // pred_fallthru
        _
      %p114 = scmp.lt.s32.totalorder %s15, 2
      // Predicated region
      $region17: #{tpu_custom_call.1} parent=5 // pred_check
        %p115 = pneg %p114
      $region18: #{tpu_custom_call.1} parent=5 // pred_check_branch
        %117 = sbr.rel (%p115) target = $region20
      $region19: #{tpu_custom_call.1} parent=5 // pred_region
        // Predicated region
        $region21: #{tpu_custom_call.1} parent=19 // pred_check
          %p118 = pneg %p35
        $region22: #{tpu_custom_call.1} parent=19 // pred_check_branch
          %120 = sbr.rel (%p118) target = $region24
        $region23: #{tpu_custom_call.1} parent=19 // pred_region
          %s121 = sand.u32 %s25, 1
          %s122 = scalar_lea.sflag [#allocation3], %s121
          %s123 = sand.u32 %s25, 1
          %s124 = smul.addr %s123, 8
          %s125 = scalar_lea.vmem [#allocation2], %s124
          %s127 = ssub.s32 128, 128
          %128 = vsyncadd %s122, %s127
          %s129 = smul.addr %s15, 128
          %s130 = scalar_lea.hbm %s0, %s129
          %s132 = sshll.u32 %s125, 4
          %s133 = int_to_ptr.vmem [resolvable:$true] %s132
          %135 = dma.hbm_to_vmem [thread:$0]  %s130, 128, %s133, %s122
        $region24: #{tpu_custom_call.1} parent=19 // pred_fallthru
          _
      $region20: #{tpu_custom_call.1} parent=5 // pred_fallthru
        _
      %p136 = scmp.le.s32.totalorder 1, %s15
      %p137 = scmp.lt.s32.totalorder %s15, 3
      %p138 = pnand %p136, %p137
      %p139 = pneg %p138
      // Predicated region
      $region25: #{tpu_custom_call.1} parent=5 // pred_check
        _
      $region26: #{tpu_custom_call.1} parent=5 // pred_check_branch
        %141 = sbr.rel (%p138) target = $region28
      $region27: #{tpu_custom_call.1} parent=5 // pred_region
        %s142 = ssub.s32 %s15, 1
        %s143 = sand.u32 %s28, 1
        %s144 = scalar_lea.sflag [#allocation3], %s143
        %s145 = sand.u32 %s28, 1
        %s146 = smul.addr %s145, 8
        %s147 = scalar_lea.vmem [#allocation2], %s146
        // Predicated region
        $region29: #{tpu_custom_call.1} parent=27 // pred_check
          %p148 = pneg %p41
        $region30: #{tpu_custom_call.1} parent=27 // pred_check_branch
          %150 = sbr.rel (%p148) target = $region32
        $region31: #{tpu_custom_call.1} parent=27 // pred_region
          %151 = dma.done %s144, 128
        $region32: #{tpu_custom_call.1} parent=27 // pred_fallthru
          _
        // Predicated region
        $region33: #{tpu_custom_call.1} parent=27 // pred_check
          %p152 = pneg %p62
        $region34: #{tpu_custom_call.1} parent=27 // pred_check_branch
          %154 = sbr.rel (%p152) target = $region36
        $region35: #{tpu_custom_call.1} parent=27 // pred_region
          %155 = dma.done [#allocation6], 128
        $region36: #{tpu_custom_call.1} parent=27 // pred_fallthru
          _
        %s156 = sand.u32 %s28, 1
        %s157 = scalar_lea.sflag [#allocation3], %s156
        %s158 = sand.u32 %s28, 1
        %s159 = smul.addr %s158, 8
        %s160 = scalar_lea.vmem [#allocation2], %s159
        %p161 = pneg %p41
        %p162 = pneg %p38
        %p163 = pneg %p62
        %p164 = pneg %p59
        %p165 = pneg %p88
        %p166 = pneg %p85
        %s167 = sand.u32 %s75, 1
        %s168 = scalar_lea.sflag [#allocation4], %s167
        %s169 = sand.u32 %s75, 1
        %s170 = smul.addr %s169, 8
        %s171 = scalar_lea.vmem [#allocation7], %s170
        %v172 = vld [vmem:[%s147] sm:$0xff]
        %v173 = vld [vmem:[#allocation5] sm:$0xff]
        %v174 = vadd.f32 %v172, %v173
        %175 = vst [vmem:[%s171] sm:$0xff] %v174
        %s176 = sand.u32 %s75, 1
        %s177 = scalar_lea.sflag [#allocation4], %s176
        %s178 = sand.u32 %s75, 1
        %s179 = smul.addr %s178, 8
        %s180 = scalar_lea.vmem [#allocation7], %s179
        // Predicated region
        $region37: #{tpu_custom_call.1} parent=27 // pred_check
          %p181 = pneg %p85
        $region38: #{tpu_custom_call.1} parent=27 // pred_check_branch
          %183 = sbr.rel (%p181) target = $region40
        $region39: #{tpu_custom_call.1} parent=27 // pred_region
          %s185 = ssub.s32 128, 128
          %186 = vsyncadd %s177, %s185
          %s187 = smul.addr %s20, 128
          %s188 = scalar_lea.hbm %s2, %s187
          %s190 = sshll.u32 %s180, 4
          %s191 = int_to_ptr.vmem [resolvable:$true] %s190
          %193 = dma.vmem_to_hbm [thread:$0]  %s191, 128, %s188, %s177
        $region40: #{tpu_custom_call.1} parent=27 // pred_fallthru
          _
      $region28: #{tpu_custom_call.1} parent=5 // pred_fallthru
        _
      %p194 = scmp.le.s32.totalorder 2, %s15
      // Predicated region
      $region41: #{tpu_custom_call.1} parent=5 // pred_check
        %p195 = pneg %p194
      $region42: #{tpu_custom_call.1} parent=5 // pred_check_branch
        %197 = sbr.rel (%p195) target = $region44
      $region43: #{tpu_custom_call.1} parent=5 // pred_region
        %s198 = ssub.s32 %s15, 2
        // Predicated region
        $region45: #{tpu_custom_call.1} parent=43 // pred_check
          %p199 = pneg %p91
        $region46: #{tpu_custom_call.1} parent=43 // pred_check_branch
          %201 = sbr.rel (%p199) target = $region48
        $region47: #{tpu_custom_call.1} parent=43 // pred_region
          %s202 = sand.u32 %s76, 1
          %s203 = scalar_lea.sflag [#allocation4], %s202
          %s204 = sand.u32 %s76, 1
          %s205 = smul.addr %s204, 8
          %s206 = scalar_lea.vmem [#allocation7], %s205
          %207 = dma.done %s203, 128
        $region48: #{tpu_custom_call.1} parent=43 // pred_fallthru
          _
      $region44: #{tpu_custom_call.1} parent=5 // pred_fallthru
        _
    $region6: #{tpu_custom_call.1} parent=1 // loop_footer
      %s19 = sadd.s32 1, %s15
    $region7: #{tpu_custom_call.1} parent=1 // loop_footer_branch
      %14 = sbr.rel target = $region3
    $region8: #{tpu_custom_call.1} parent=1 // loop_exit
      _
    %208 = vsyncpa [#allocation3], 1
    %s209 = scalar_lea.sflag [#allocation3], 1
    %210 = vsyncpa %s209, 1
    %211 = vsyncpa [#allocation6], 1
    %212 = vsyncpa [#allocation4], 1
    %s213 = scalar_lea.sflag [#allocation4], 1
    %214 = vsyncpa %s213, 1

// kernel: tpu_custom_call.1
$region0: #{tpu_custom_call.1}
  #allocation0 [shape = 'u32[]', space=smem, size = 0x4, offset = 0x4, fixed_abs, tag = 'smem constant byte address 0x4 - core index']
  #allocation1 [shape = 'u32[144,128]{1,0:T(1,128)}', space=vmem, size = 0x12000, scoped, tag = 'internal scratch']
  #allocation18 [shape = 's32[]', space=sflag, size = 0x4, offset = 0, fixed_abs, tag = 'sflag constant byte address 0x0 - dummy sync flag']
  #allocation20 [shape = 's32[]', space=sflag, size = 0x4, offset = 0, fixed_abs, tag = 'sflag constant byte address 0x0 - dummy sync flag']
  #allocation22 [shape = 's32[]', space=sflag, size = 0x4, offset = 0, fixed_abs, tag = 'sflag constant byte address 0x0 - dummy sync flag']
  %s0 = inlined_call_operand.hbm [shape: f32[2,32,32], index: 0, kind: input, shape index: {}]
  %s1 = inlined_call_operand.hbm [shape: f32[32,16], index: 1, kind: input, shape index: {}]
  %s2 = inlined_call_operand.hbm [shape: f32[32,16], index: 2, kind: input, shape index: {}]
  %s3 = inlined_call_operand.hbm [shape: f32[1,32], index: 3, kind: input, shape index: {}]
  %s4 = inlined_call_operand.hbm [shape: bf16[32,128], index: 4, kind: input, shape index: {}]
  %s5 = inlined_call_operand.hbm [shape: f32[1,16], index: 5, kind: input, shape index: {}]
  %s6 = inlined_call_operand.hbm [shape: f32[1,16], index: 6, kind: input, shape index: {}]
  %s7 = inlined_call_operand.hbm [shape: bf16[2,4,32,16], index: 7, kind: output, shape index: {0}]
  %s8 = inlined_call_operand.hbm [shape: bf16[2,2,32,16], index: 8, kind: output, shape index: {1}]
  %s9 = inlined_call_operand.hbm [shape: bf16[2,2,32,16], index: 9, kind: output, shape index: {2}]
  %10 = xla_tuple %s7, %s8, %s9
  %s11 = sld [smem:[#allocation0]]
  $region105: #{tpu_custom_call.1} parent=0
    _
  %s13 = ssub.s32 1, %s11
  %s14 = scalar_select 0, %s13, %s11
  $region1: #{tpu_custom_call.1} parent=0
    #allocation2 [shape = 'u8[16384]{0}', space=vmem, size = 0x4000, scoped, tag = 'input window, operand 0']
    #allocation3 [shape = 's32[2]{0}', space=sflag, size = 0x8, scoped, tag = 'scoped memory for tpu_custom_call.1']
    #allocation4 [shape = 's32[2]{0}', space=sflag, size = 0x8, scoped, tag = 'scoped memory for tpu_custom_call.1']
    #allocation5 [shape = 'u8[16384]{0}', space=vmem, size = 0x4000, scoped, tag = 'input window, operand 1']
    #allocation6 [shape = 's32[2]{0}', space=sflag, size = 0x8, scoped, tag = 'scoped memory for tpu_custom_call.1']
    #allocation7 [shape = 'u8[16384]{0}', space=vmem, size = 0x4000, scoped, tag = 'input window, operand 2']
    #allocation8 [shape = 'u8[512]{0}', space=vmem, size = 0x400, scoped, tag = 'input window, operand 3, single buffered']
    #allocation9 [shape = 's32[1]{0}', space=sflag, size = 0x4, scoped, tag = 'scoped memory for tpu_custom_call.1']
    #allocation10 [shape = 'u8[8192]{0}', space=vmem, size = 0x2000, scoped, tag = 'input window, operand 4, single buffered']
    #allocation11 [shape = 'u8[512]{0}', space=vmem, size = 0x400, scoped, tag = 'input window, operand 5, single buffered']
    #allocation12 [shape = 's32[1]{0}', space=sflag, size = 0x4, scoped, tag = 'scoped memory for tpu_custom_call.1']
    #allocation13 [shape = 'u8[512]{0}', space=vmem, size = 0x400, scoped, tag = 'input window, operand 6, single buffered']
    #allocation14 [shape = 'u8[32768]{0}', space=vmem, size = 0x8000, scoped, tag = 'output window, operand 0']
    #allocation15 [shape = 'u8[16384]{0}', space=vmem, size = 0x4000, scoped, tag = 'output window, operand 1']
    #allocation16 [shape = 's32[2]{0}', space=sflag, size = 0x8, scoped, tag = 'scoped memory for tpu_custom_call.1']
    #allocation17 [shape = 'u8[16384]{0}', space=vmem, size = 0x4000, scoped, tag = 'output window, operand 2']
    %15 = vsyncpa [#allocation3], 0
    %s16 = scalar_lea.sflag [#allocation3], 1
    %17 = vsyncpa %s16, 0
    %18 = vsyncpa [#allocation6], 0
    %s19 = scalar_lea.sflag [#allocation6], 1
    %20 = vsyncpa %s19, 0
    %21 = vsyncpa [#allocation9], 0
    %22 = vsyncpa [#allocation12], 0
    %23 = vsyncpa [#allocation4], 0
    %s24 = scalar_lea.sflag [#allocation4], 1
    %25 = vsyncpa %s24, 0
    %26 = vsyncpa [#allocation16], 0
    %s27 = scalar_lea.sflag [#allocation16], 1
    %28 = vsyncpa %s27, 0
    loop: start=0, step=1, limit=6
    $region2: #{tpu_custom_call.1} parent=1 // loop_pre_header
      _
    $region3: #{tpu_custom_call.1} parent=1 // loop_header
      %s30 = sphi 0, %s34
      %p31 = scmp.ge.s32.totalorder %s30, 6
      %s37 = sphi 0, %s49
      %s38 = sphi 0, %s45
      %s39 = sphi 0, %s37
      %s40 = sphi 0, %s38
      %s41 = sphi 0, %s39
      %s42 = sphi 0, %s40
      %s54 = sphi 0, %s56
      %s57 = sphi 0, %s54
      %s58 = sphi 0, %s57
      %s74 = sphi 0, %s58
      %s80 = sphi 0, %s82
      %s83 = sphi 0, %s80
      %s84 = sphi 0, %s83
      %s100 = sphi 0, %s84
      %s106 = sphi 0, %s108
      %s109 = sphi 0, %s106
      %s110 = sphi 0, %s109
      %s126 = sphi 0, %s110
      %s130 = sphi 0, %s130
      %s132 = sphi 0, %s130
      %s133 = sphi 0, %s132
      %s147 = sphi 0, %s133
      %s151 = sphi 0, %s151
      %s153 = sphi 0, %s151
      %s154 = sphi 0, %s153
      %s168 = sphi 0, %s154
      %s172 = sphi 0, %s172
      %s174 = sphi 0, %s172
      %s175 = sphi 0, %s174
      %s189 = sphi 0, %s175
      %s193 = sphi 0, %s193
      %s195 = sphi 0, %s193
      %s196 = sphi 0, %s195
      %s210 = sphi 0, %s196
      %s218 = sphi 0, %s220
      %s221 = sphi 0, %s218
      %s222 = sphi 0, %s221
      %s238 = sphi 0, %s222
      %s246 = sphi 0, %s248
      %s249 = sphi 0, %s246
      %s250 = sphi 0, %s249
      %s266 = sphi 0, %s250
      %s274 = sphi 0, %s276
      %s277 = sphi 0, %s274
      %s278 = sphi 0, %s277
      %s294 = sphi 0, %s278
    $region4: #{tpu_custom_call.1} parent=1 // loop_header_branch
      %33 = sbr.rel (%p31) target = $region8
    $region5: #{tpu_custom_call.1} parent=1 // loop_body
      %s35 = ssub.s32 %s30, 1
      %s36 = ssub.s32 %s30, 2
      %s43 = sadd.s32 1, %s38
      %p44 = scmp.ge.s32.totalorder %s43, 2
      %s45 = scalar_select %p44, 0, %s43
      %s46 = sadd.s32 1, %s37
      %s47 = scalar_select %p44, %s46, %s37
      %p48 = scmp.ge.s32.totalorder %s47, 2
      %s49 = scalar_select %p48, 0, %s47
      %s50 = ssub.s32 %s37, %s49
      %s51 = ssub.s32 %s38, %s45
      %s52 = sor.u32 %s50, %s51
      %p53 = scmp.eq.s32.totalorder %s52, 0
      %s55 = sadd.s32 %s54, 1
      %s56 = scalar_select %p53, %s54, %s55
      %p59 = pneg %p53
      %p60 = scmp.eq.s32.totalorder %s30, 3
      %p61 = por %p59, %p60
      %p62 = scmp.ne.s32.totalorder %s54, %s57
      %p63 = scmp.eq.s32.totalorder %s30, 0
      %p64 = por %p62, %p63
      %p65 = scmp.ne.s32.totalorder %s54, %s57
      %p66 = scmp.eq.s32.totalorder %s35, 3
      %p67 = por %p65, %p66
      %p68 = scmp.ne.s32.totalorder %s57, %s58
      %p69 = scmp.eq.s32.totalorder %s35, 0
      %p70 = por %p68, %p69
      %p71 = scmp.ne.s32.totalorder %s57, %s58
      %p72 = scmp.eq.s32.totalorder %s36, 3
      %p73 = por %p71, %p72
      %p75 = scmp.ne.s32.totalorder %s58, %s74
      %p76 = scmp.eq.s32.totalorder %s36, 0
      %p77 = por %p75, %p76
      %s78 = ssub.s32 %s38, %s45
      %p79 = scmp.eq.s32.totalorder %s78, 0
      %s81 = sadd.s32 %s80, 1
      %s82 = scalar_select %p79, %s80, %s81
      %p85 = pneg %p79
      %p86 = scmp.eq.s32.totalorder %s30, 3
      %p87 = por %p85, %p86
      %p88 = scmp.ne.s32.totalorder %s80, %s83
      %p89 = scmp.eq.s32.totalorder %s30, 0
      %p90 = por %p88, %p89
      %p91 = scmp.ne.s32.totalorder %s80, %s83
      %p92 = scmp.eq.s32.totalorder %s35, 3
      %p93 = por %p91, %p92
      %p94 = scmp.ne.s32.totalorder %s83, %s84
      %p95 = scmp.eq.s32.totalorder %s35, 0
      %p96 = por %p94, %p95
      %p97 = scmp.ne.s32.totalorder %s83, %s84
      %p98 = scmp.eq.s32.totalorder %s36, 3
      %p99 = por %p97, %p98
      %p101 = scmp.ne.s32.totalorder %s84, %s100
      %p102 = scmp.eq.s32.totalorder %s36, 0
      %p103 = por %p101, %p102
      %s104 = ssub.s32 %s38, %s45
      %p105 = scmp.eq.s32.totalorder %s104, 0
      %s107 = sadd.s32 %s106, 1
      %s108 = scalar_select %p105, %s106, %s107
      %p111 = pneg %p105
      %p112 = scmp.eq.s32.totalorder %s30, 3
      %p113 = por %p111, %p112
      %p114 = scmp.ne.s32.totalorder %s106, %s109
      %p115 = scmp.eq.s32.totalorder %s30, 0
      %p116 = por %p114, %p115
      %p117 = scmp.ne.s32.totalorder %s106, %s109
      %p118 = scmp.eq.s32.totalorder %s35, 3
      %p119 = por %p117, %p118
      %p120 = scmp.ne.s32.totalorder %s109, %s110
      %p121 = scmp.eq.s32.totalorder %s35, 0
      %p122 = por %p120, %p121
      %p123 = scmp.ne.s32.totalorder %s109, %s110
      %p124 = scmp.eq.s32.totalorder %s36, 3
      %p125 = por %p123, %p124
      %p127 = scmp.ne.s32.totalorder %s110, %s126
      %p128 = scmp.eq.s32.totalorder %s36, 0
      %p129 = por %p127, %p128
      %s131 = sadd.s32 %s130, 1
      %p134 = scmp.eq.s32.totalorder %s30, 3
      %p135 = scmp.ne.s32.totalorder %s130, %s132
      %p136 = scmp.eq.s32.totalorder %s30, 0
      %p137 = por %p135, %p136
      %p138 = scmp.ne.s32.totalorder %s130, %s132
      %p139 = scmp.eq.s32.totalorder %s35, 3
      %p140 = por %p138, %p139
      %p141 = scmp.ne.s32.totalorder %s132, %s133
      %p142 = scmp.eq.s32.totalorder %s35, 0
      %p143 = por %p141, %p142
      %p144 = scmp.ne.s32.totalorder %s132, %s133
      %p145 = scmp.eq.s32.totalorder %s36, 3
      %p146 = por %p144, %p145
      %p148 = scmp.ne.s32.totalorder %s133, %s147
      %p149 = scmp.eq.s32.totalorder %s36, 0
      %p150 = por %p148, %p149
      %s152 = sadd.s32 %s151, 1
      %p155 = scmp.eq.s32.totalorder %s30, 3
      %p156 = scmp.ne.s32.totalorder %s151, %s153
      %p157 = scmp.eq.s32.totalorder %s30, 0
      %p158 = por %p156, %p157
      %p159 = scmp.ne.s32.totalorder %s151, %s153
      %p160 = scmp.eq.s32.totalorder %s35, 3
      %p161 = por %p159, %p160
      %p162 = scmp.ne.s32.totalorder %s153, %s154
      %p163 = scmp.eq.s32.totalorder %s35, 0
      %p164 = por %p162, %p163
      %p165 = scmp.ne.s32.totalorder %s153, %s154
      %p166 = scmp.eq.s32.totalorder %s36, 3
      %p167 = por %p165, %p166
      %p169 = scmp.ne.s32.totalorder %s154, %s168
      %p170 = scmp.eq.s32.totalorder %s36, 0
      %p171 = por %p169, %p170
      %s173 = sadd.s32 %s172, 1
      %p176 = scmp.eq.s32.totalorder %s30, 3
      %p177 = scmp.ne.s32.totalorder %s172, %s174
      %p178 = scmp.eq.s32.totalorder %s30, 0
      %p179 = por %p177, %p178
      %p180 = scmp.ne.s32.totalorder %s172, %s174
      %p181 = scmp.eq.s32.totalorder %s35, 3
      %p182 = por %p180, %p181
      %p183 = scmp.ne.s32.totalorder %s174, %s175
      %p184 = scmp.eq.s32.totalorder %s35, 0
      %p185 = por %p183, %p184
      %p186 = scmp.ne.s32.totalorder %s174, %s175
      %p187 = scmp.eq.s32.totalorder %s36, 3
      %p188 = por %p186, %p187
      %p190 = scmp.ne.s32.totalorder %s175, %s189
      %p191 = scmp.eq.s32.totalorder %s36, 0
      %p192 = por %p190, %p191
      %s194 = sadd.s32 %s193, 1
      %p197 = scmp.eq.s32.totalorder %s30, 3
      %p198 = scmp.ne.s32.totalorder %s193, %s195
      %p199 = scmp.eq.s32.totalorder %s30, 0
      %p200 = por %p198, %p199
      %p201 = scmp.ne.s32.totalorder %s193, %s195
      %p202 = scmp.eq.s32.totalorder %s35, 3
      %p203 = por %p201, %p202
      %p204 = scmp.ne.s32.totalorder %s195, %s196
      %p205 = scmp.eq.s32.totalorder %s35, 0
      %p206 = por %p204, %p205
      %p207 = scmp.ne.s32.totalorder %s195, %s196
      %p208 = scmp.eq.s32.totalorder %s36, 3
      %p209 = por %p207, %p208
      %p211 = scmp.ne.s32.totalorder %s196, %s210
      %p212 = scmp.eq.s32.totalorder %s36, 0
      %p213 = por %p211, %p212
      %s214 = ssub.s32 %s37, %s49
      %s215 = ssub.s32 %s38, %s45
      %s216 = sor.u32 %s214, %s215
      %p217 = scmp.eq.s32.totalorder %s216, 0
      %s219 = sadd.s32 %s218, 1
      %s220 = scalar_select %p217, %s218, %s219
      %p223 = pneg %p217
      %p224 = scmp.eq.s32.totalorder %s30, 3
      %p225 = por %p223, %p224
      %p226 = scmp.ne.s32.totalorder %s218, %s221
      %p227 = scmp.eq.s32.totalorder %s30, 0
      %p228 = por %p226, %p227
      %p229 = scmp.ne.s32.totalorder %s218, %s221
      %p230 = scmp.eq.s32.totalorder %s35, 3
      %p231 = por %p229, %p230
      %p232 = scmp.ne.s32.totalorder %s221, %s222
      %p233 = scmp.eq.s32.totalorder %s35, 0
      %p234 = por %p232, %p233
      %p235 = scmp.ne.s32.totalorder %s221, %s222
      %p236 = scmp.eq.s32.totalorder %s36, 3
      %p237 = por %p235, %p236
      %p239 = scmp.ne.s32.totalorder %s222, %s238
      %p240 = scmp.eq.s32.totalorder %s36, 0
      %p241 = por %p239, %p240
      %s242 = ssub.s32 %s37, %s49
      %s243 = ssub.s32 %s38, %s45
      %s244 = sor.u32 %s242, %s243
      %p245 = scmp.eq.s32.totalorder %s244, 0
      %s247 = sadd.s32 %s246, 1
      %s248 = scalar_select %p245, %s246, %s247
      %p251 = pneg %p245
      %p252 = scmp.eq.s32.totalorder %s30, 3
      %p253 = por %p251, %p252
      %p254 = scmp.ne.s32.totalorder %s246, %s249
      %p255 = scmp.eq.s32.totalorder %s30, 0
      %p256 = por %p254, %p255
      %p257 = scmp.ne.s32.totalorder %s246, %s249
      %p258 = scmp.eq.s32.totalorder %s35, 3
      %p259 = por %p257, %p258
      %p260 = scmp.ne.s32.totalorder %s249, %s250
      %p261 = scmp.eq.s32.totalorder %s35, 0
      %p262 = por %p260, %p261
      %p263 = scmp.ne.s32.totalorder %s249, %s250
      %p264 = scmp.eq.s32.totalorder %s36, 3
      %p265 = por %p263, %p264
      %p267 = scmp.ne.s32.totalorder %s250, %s266
      %p268 = scmp.eq.s32.totalorder %s36, 0
      %p269 = por %p267, %p268
      %s270 = ssub.s32 %s37, %s49
      %s271 = ssub.s32 %s38, %s45
      %s272 = sor.u32 %s270, %s271
      %p273 = scmp.eq.s32.totalorder %s272, 0
      %s275 = sadd.s32 %s274, 1
      %s276 = scalar_select %p273, %s274, %s275
      %p279 = pneg %p273
      %p280 = scmp.eq.s32.totalorder %s30, 3
      %p281 = por %p279, %p280
      %p282 = scmp.ne.s32.totalorder %s274, %s277
      %p283 = scmp.eq.s32.totalorder %s30, 0
      %p284 = por %p282, %p283
      %p285 = scmp.ne.s32.totalorder %s274, %s277
      %p286 = scmp.eq.s32.totalorder %s35, 3
      %p287 = por %p285, %p286
      %p288 = scmp.ne.s32.totalorder %s277, %s278
      %p289 = scmp.eq.s32.totalorder %s35, 0
      %p290 = por %p288, %p289
      %p291 = scmp.ne.s32.totalorder %s277, %s278
      %p292 = scmp.eq.s32.totalorder %s36, 3
      %p293 = por %p291, %p292
      %p295 = scmp.ne.s32.totalorder %s278, %s294
      %p296 = scmp.eq.s32.totalorder %s36, 0
      %p297 = por %p295, %p296
      %p298 = scmp.le.s32.totalorder 1, %s30
      %p299 = scmp.lt.s32.totalorder %s30, 5
      %p300 = pnand %p298, %p299
      %p301 = pneg %p300
      // Predicated region
      $region9: #{tpu_custom_call.1} parent=5 // pred_check
        _
      $region10: #{tpu_custom_call.1} parent=5 // pred_check_branch
        %303 = sbr.rel (%p300) target = $region12
      $region11: #{tpu_custom_call.1} parent=5 // pred_region
        %s304 = ssub.s32 %s30, 1
        // Predicated region
        $region13: #{tpu_custom_call.1} parent=11 // pred_check
          %p305 = pneg %p143
        $region14: #{tpu_custom_call.1} parent=11 // pred_check_branch
          %307 = sbr.rel (%p305) target = $region16
        $region15: #{tpu_custom_call.1} parent=11 // pred_region
          %s309 = ssub.s32 16, 16
          %310 = vsyncadd [#allocation9], %s309
          %s312 = sshll.u32 [#allocation8], 4
          %s313 = int_to_ptr.vmem [resolvable:$true] %s312
          %315 = dma.hbm_to_vmem [thread:$0]  %s3, 16, %s313, [#allocation9]
        $region16: #{tpu_custom_call.1} parent=11 // pred_fallthru
          _
        // Predicated region
        $region17: #{tpu_custom_call.1} parent=11 // pred_check
          %p316 = pneg %p164
        $region18: #{tpu_custom_call.1} parent=11 // pred_check_branch
          %318 = sbr.rel (%p316) target = $region20
        $region19: #{tpu_custom_call.1} parent=11 // pred_region
          %s320 = ssub.s32 256, 256
          %321 = vsyncadd [#allocation9], %s320
          %s322 = sshll.u32 [#allocation10], 4
          %s323 = int_to_ptr.vmem [resolvable:$true] %s322
          %328 = dma.hbm_to_vmem [thread:$0]  %s4, 256, %s323, [#allocation9], 64, 64, 4
        $region20: #{tpu_custom_call.1} parent=11 // pred_fallthru
          _
        // Predicated region
        $region21: #{tpu_custom_call.1} parent=11 // pred_check
          %p329 = pneg %p185
        $region22: #{tpu_custom_call.1} parent=11 // pred_check_branch
          %331 = sbr.rel (%p329) target = $region24
        $region23: #{tpu_custom_call.1} parent=11 // pred_region
          %s333 = ssub.s32 16, 16
          %334 = vsyncadd [#allocation12], %s333
          %s336 = sshll.u32 [#allocation11], 4
          %s337 = int_to_ptr.vmem [resolvable:$true] %s336
          %339 = dma.hbm_to_vmem [thread:$0]  %s5, 16, %s337, [#allocation12]
        $region24: #{tpu_custom_call.1} parent=11 // pred_fallthru
          _
        // Predicated region
        $region25: #{tpu_custom_call.1} parent=11 // pred_check
          %p340 = pneg %p206
        $region26: #{tpu_custom_call.1} parent=11 // pred_check_branch
          %342 = sbr.rel (%p340) target = $region28
        $region27: #{tpu_custom_call.1} parent=11 // pred_region
          %s344 = ssub.s32 16, 16
          %345 = vsyncadd [#allocation12], %s344
          %s347 = sshll.u32 [#allocation13], 4
          %s348 = int_to_ptr.vmem [resolvable:$true] %s347
          %350 = dma.hbm_to_vmem [thread:$0]  %s6, 16, %s348, [#allocation12]
        $region28: #{tpu_custom_call.1} parent=11 // pred_fallthru
          _
      $region12: #{tpu_custom_call.1} parent=5 // pred_fallthru
        _
      %p351 = scmp.lt.s32.totalorder %s30, 4
      // Predicated region
      $region29: #{tpu_custom_call.1} parent=5 // pred_check
        %p352 = pneg %p351
      $region30: #{tpu_custom_call.1} parent=5 // pred_check_branch
        %354 = sbr.rel (%p352) target = $region32
      $region31: #{tpu_custom_call.1} parent=5 // pred_region
        // Predicated region
        $region33: #{tpu_custom_call.1} parent=31 // pred_check
          %p355 = pneg %p64
        $region34: #{tpu_custom_call.1} parent=31 // pred_check_branch
          %357 = sbr.rel (%p355) target = $region36
        $region35: #{tpu_custom_call.1} parent=31 // pred_region
          %s358 = sand.u32 %s54, 1
          %s359 = scalar_lea.sflag [#allocation3], %s358
          %s360 = sand.u32 %s54, 1
          %s361 = smul.addr %s360, 16
          %s362 = scalar_lea.vmem [#allocation2], %s361
          %s363 = smul.u32 2, %s38
          %s365 = ssub.s32 256, 256
          %366 = vsyncadd %s359, %s365
          %s367 = smul.addr %s37, 4
          %s368 = sadd.s32 %s363, %s367
          %s369 = smul.addr %s368, 128
          %s370 = scalar_lea.hbm %s0, %s369
          %s371 = sshll.u32 %s362, 4
          %s372 = int_to_ptr.vmem [resolvable:$true] %s371
          %377 = dma.hbm_to_vmem [thread:$0]  %s370, 256, %s372, %s359, 128, 128, 8
        $region36: #{tpu_custom_call.1} parent=31 // pred_fallthru
          _
        // Predicated region
        $region37: #{tpu_custom_call.1} parent=31 // pred_check
          %p378 = pneg %p90
        $region38: #{tpu_custom_call.1} parent=31 // pred_check_branch
          %380 = sbr.rel (%p378) target = $region40
        $region39: #{tpu_custom_call.1} parent=31 // pred_region
          %s381 = sand.u32 %s30, 1
          %s382 = scalar_lea.sflag [#allocation6], %s381
          %s383 = sand.u32 %s80, 1
          %s384 = smul.addr %s383, 16
          %s385 = scalar_lea.vmem [#allocation5], %s384
          %s386 = smul.u32 2, %s38
          %s388 = ssub.s32 256, 256
          %389 = vsyncadd %s382, %s388
          %s390 = smul.addr %s386, 128
          %s391 = scalar_lea.hbm %s1, %s390
          %s392 = sshll.u32 %s385, 4
          %s393 = int_to_ptr.vmem [resolvable:$true] %s392
          %398 = dma.hbm_to_vmem [thread:$0]  %s391, 256, %s393, %s382, 128, 128, 8
        $region40: #{tpu_custom_call.1} parent=31 // pred_fallthru
          _
        // Predicated region
        $region41: #{tpu_custom_call.1} parent=31 // pred_check
          %p399 = pneg %p116
        $region42: #{tpu_custom_call.1} parent=31 // pred_check_branch
          %401 = sbr.rel (%p399) target = $region44
        $region43: #{tpu_custom_call.1} parent=31 // pred_region
          %s402 = sand.u32 %s30, 1
          %s403 = scalar_lea.sflag [#allocation6], %s402
          %s404 = sand.u32 %s106, 1
          %s405 = smul.addr %s404, 16
          %s406 = scalar_lea.vmem [#allocation7], %s405
          %s407 = smul.u32 2, %s38
          %s409 = ssub.s32 256, 256
          %410 = vsyncadd %s403, %s409
          %s411 = smul.addr %s407, 128
          %s412 = scalar_lea.hbm %s2, %s411
          %s413 = sshll.u32 %s406, 4
          %s414 = int_to_ptr.vmem [resolvable:$true] %s413
          %419 = dma.hbm_to_vmem [thread:$0]  %s412, 256, %s414, %s403, 128, 128, 8
        $region44: #{tpu_custom_call.1} parent=31 // pred_fallthru
          _
      $region32: #{tpu_custom_call.1} parent=5 // pred_fallthru
        _
      %p420 = scmp.le.s32.totalorder 1, %s30
      %p421 = scmp.lt.s32.totalorder %s30, 5
      %p422 = pnand %p420, %p421
      %p423 = pneg %p422
      // Predicated region
      $region45: #{tpu_custom_call.1} parent=5 // pred_check
        _
      $region46: #{tpu_custom_call.1} parent=5 // pred_check_branch
        %425 = sbr.rel (%p422) target = $region48
      $region47: #{tpu_custom_call.1} parent=5 // pred_region
        %s426 = ssub.s32 %s30, 1
        %s427 = sand.u32 %s57, 1
        %s428 = scalar_lea.sflag [#allocation3], %s427
        %s429 = sand.u32 %s57, 1
        %s430 = smul.addr %s429, 16
        %s431 = scalar_lea.vmem [#allocation2], %s430
        // Predicated region
        $region49: #{tpu_custom_call.1} parent=47 // pred_check
          %p432 = pneg %p70
        $region50: #{tpu_custom_call.1} parent=47 // pred_check_branch
          %434 = sbr.rel (%p432) target = $region52
        $region51: #{tpu_custom_call.1} parent=47 // pred_region
          %435 = dma.done %s428, 256
        $region52: #{tpu_custom_call.1} parent=47 // pred_fallthru
          _
        %s436 = sand.u32 %s35, 1
        %s437 = scalar_lea.sflag [#allocation6], %s436
        %s438 = sand.u32 %s83, 1
        %s439 = smul.addr %s438, 16
        %s440 = scalar_lea.vmem [#allocation5], %s439
        // Predicated region
        $region53: #{tpu_custom_call.1} parent=47 // pred_check
          %p441 = pneg %p96
        $region54: #{tpu_custom_call.1} parent=47 // pred_check_branch
          %443 = sbr.rel (%p441) target = $region56
        $region55: #{tpu_custom_call.1} parent=47 // pred_region
          %444 = dma.done %s437, 256
        $region56: #{tpu_custom_call.1} parent=47 // pred_fallthru
          _
        %s445 = sand.u32 %s35, 1
        %s446 = scalar_lea.sflag [#allocation6], %s445
        %s447 = sand.u32 %s109, 1
        %s448 = smul.addr %s447, 16
        %s449 = scalar_lea.vmem [#allocation7], %s448
        // Predicated region
        $region57: #{tpu_custom_call.1} parent=47 // pred_check
          %p450 = pneg %p122
        $region58: #{tpu_custom_call.1} parent=47 // pred_check_branch
          %452 = sbr.rel (%p450) target = $region60
        $region59: #{tpu_custom_call.1} parent=47 // pred_region
          %453 = dma.done %s446, 256
        $region60: #{tpu_custom_call.1} parent=47 // pred_fallthru
          _
        // Predicated region
        $region61: #{tpu_custom_call.1} parent=47 // pred_check
          %p454 = pneg %p143
        $region62: #{tpu_custom_call.1} parent=47 // pred_check_branch
          %456 = sbr.rel (%p454) target = $region64
        $region63: #{tpu_custom_call.1} parent=47 // pred_region
          %457 = dma.done [#allocation9], 16
        $region64: #{tpu_custom_call.1} parent=47 // pred_fallthru
          _
        // Predicated region
        $region65: #{tpu_custom_call.1} parent=47 // pred_check
          %p458 = pneg %p164
        $region66: #{tpu_custom_call.1} parent=47 // pred_check_branch
          %460 = sbr.rel (%p458) target = $region68
        $region67: #{tpu_custom_call.1} parent=47 // pred_region
          %461 = dma.done [#allocation9], 256
        $region68: #{tpu_custom_call.1} parent=47 // pred_fallthru
          _
        // Predicated region
        $region69: #{tpu_custom_call.1} parent=47 // pred_check
          %p462 = pneg %p185
        $region70: #{tpu_custom_call.1} parent=47 // pred_check_branch
          %464 = sbr.rel (%p462) target = $region72
        $region71: #{tpu_custom_call.1} parent=47 // pred_region
          %465 = dma.done [#allocation12], 16
        $region72: #{tpu_custom_call.1} parent=47 // pred_fallthru
          _
        // Predicated region
        $region73: #{tpu_custom_call.1} parent=47 // pred_check
          %p466 = pneg %p206
        $region74: #{tpu_custom_call.1} parent=47 // pred_check_branch
          %468 = sbr.rel (%p466) target = $region76
        $region75: #{tpu_custom_call.1} parent=47 // pred_region
          %469 = dma.done [#allocation12], 16
        $region76: #{tpu_custom_call.1} parent=47 // pred_fallthru
          _
        %s470 = sand.u32 %s57, 1
        %s471 = scalar_lea.sflag [#allocation3], %s470
        %s472 = sand.u32 %s57, 1
        %s473 = smul.addr %s472, 16
        %s474 = scalar_lea.vmem [#allocation2], %s473
        %p475 = pneg %p70
        %p476 = pneg %p67
        %s477 = sand.u32 %s35, 1
        %s478 = scalar_lea.sflag [#allocation6], %s477
        %s479 = sand.u32 %s83, 1
        %s480 = smul.addr %s479, 16
        %s481 = scalar_lea.vmem [#allocation5], %s480
        %p482 = pneg %p96
        %p483 = pneg %p93
        %s484 = sand.u32 %s35, 1
        %s485 = scalar_lea.sflag [#allocation6], %s484
        %s486 = sand.u32 %s109, 1
        %s487 = smul.addr %s486, 16
        %s488 = scalar_lea.vmem [#allocation7], %s487
        %p489 = pneg %p122
        %p490 = pneg %p119
        %p491 = pneg %p143
        %p492 = pneg %p140
        %p493 = pneg %p164
        %p494 = pneg %p161
        %p495 = pneg %p185
        %p496 = pneg %p182
        %p497 = pneg %p206
        %p498 = pneg %p203
        %p499 = pneg %p234
        %p500 = pneg %p231
        %s501 = sand.u32 %s221, 1
        %s502 = scalar_lea.sflag [#allocation4], %s501
        %s503 = sand.u32 %s221, 1
        %s504 = smul.addr %s503, 32
        %s505 = scalar_lea.vmem [#allocation14], %s504
        %p506 = pneg %p262
        %p507 = pneg %p259
        %s508 = sand.u32 %s35, 1
        %s509 = scalar_lea.sflag [#allocation16], %s508
        %s510 = sand.u32 %s249, 1
        %s511 = smul.addr %s510, 16
        %s512 = scalar_lea.vmem [#allocation15], %s511
        %p513 = pneg %p290
        %p514 = pneg %p287
        %s515 = sand.u32 %s35, 1
        %s516 = scalar_lea.sflag [#allocation16], %s515
        %s517 = sand.u32 %s277, 1
        %s518 = smul.addr %s517, 16
        %s519 = scalar_lea.vmem [#allocation17], %s518
        %s520 = smul.u32 2, %s40
        %s521 = smul.u32 2, %s40
        %s522 = smul.u32 2, %s40
        %s523 = smul.u32 2, %s40
        %s524 = smul.u32 2, %s40
        %s525 = smul.u32 2, %s40
        %v527 = vld [vmem:[%s431] sm:$0xff]
        %v528 = vld [vmem:[%s431 + $0x8] sm:$0xff]
        %v529 = vld [vmem:[#allocation8] sm:$0x1]
        %v530 = vmul.f32 %v527, %v527
        %v531 = vmul.f32 %v528, %v528
        %vm532 = vcmask 261120
        %v533 = vsel %vm532, %v530, 0.0
        %534 = vadd.xlane.f32.xlu0 %v533
        %v535 = vpop.xlane.xlu0 %534
        %v536 = vsel %vm532, %v531, 0.0
        %537 = vadd.xlane.f32.xlu0 %v536
        %v538 = vpop.xlane.xlu0 %537
        %v539 = vrcp.pop 32.0
        %v540 = vmul.f32 %v535, %v539
        %v541 = vmul.f32 %v538, %v539
        %v542 = vadd.f32 %v540, 1e-05
        %v543 = vadd.f32 %v541, 1e-05
        %v544 = vrsqrt.pop %v542
        %v545 = vrsqrt.pop %v543
        %v546 = vmul.f32 %v527, %v544
        %v547 = vmul.f32 %v528, %v545
        %v549 = vlaneseq
        %v550 = vshrl.u32 %v549, 7
        %v551 = vsub.s32 0, %v550
        %v552 = vrot.slane %v529, %v551
        %v554 = vmul.f32 %v546, %v552
        %v555 = vmul.f32 %v547, %v552
        %v556 = vpack.c.bf16 %v555, %v554
        %v557 = vld [vmem:[#allocation10] sm:$0xf]
        %v558 = vld [vmem:[#allocation10 + $0x4] sm:$0xf]
        %v559 = vld [vmem:[#allocation10 + $0x8] sm:$0xf]
        %v560 = vld [vmem:[#allocation10 + $0xc] sm:$0xf]
        %v565 = vunpack.c.l.b16 %v557
        %v566 = vunpack.c.l.b16 %v558
        %v567 = vunpack.c.l.b16 %v559
        %v568 = vunpack.c.l.b16 %v560
        %v569 = vpack.c.b16 %v566, %v565
        %v570 = vpack.c.b16 %v568, %v567
        %v574 = vsel %vm532, %v556, 0
        %576 = vmatprep.subr.bf16.mxu0 0
        %577 = vmatpush1.bf16.msra.mxu0 %v569
        %578 = vmatprep.subr.bf16.mxu0 0
        %579 = vmatpush1.bf16.msra.mxu0 %v570
        %580 = vmatprep.subr.bf16.mxu0 0
        %581 = vmatpush1.bf16.msra.mxu0 0
        %582 = vmatprep.subr.bf16.mxu0 0
        %583 = vmatpush1.bf16.msra.mxu0 0
        %584 = vmatprep.subr.bf16.mxu0 0
        %585 = vmatpush1.bf16.msra.mxu0 0
        %586 = vmatprep.subr.bf16.mxu0 0
        %587 = vmatpush1.bf16.msra.mxu0 0
        %588 = vmatprep.subr.bf16.mxu0 0
        %589 = vmatpush1.bf16.msra.mxu0 0
        %590 = vmatprep.subr.bf16.mxu0 0
        %591 = vmatpush1.bf16.msra.mxu0 0
        %592 = vmatprep.subr.bf16.mxu0 0
        %593 = vmatpush1.bf16.msra.mxu0 0
        %594 = vmatprep.subr.bf16.mxu0 0
        %595 = vmatpush1.bf16.msra.mxu0 0
        %596 = vmatprep.subr.bf16.mxu0 0
        %597 = vmatpush1.bf16.msra.mxu0 0
        %598 = vmatprep.subr.bf16.mxu0 0
        %599 = vmatpush1.bf16.msra.mxu0 0
        %600 = vmatprep.subr.bf16.mxu0 0
        %601 = vmatpush1.bf16.msra.mxu0 0
        %602 = vmatprep.subr.bf16.mxu0 0
        %603 = vmatpush1.bf16.msra.mxu0 0
        %604 = vmatprep.subr.bf16.mxu0 0
        %605 = vmatpush1.bf16.msra.mxu0 0
        %606 = vmatprep.subr.bf16.mxu0 0
        %607 = vmatpush1.bf16.msra.mxu0 0
        %608 = vmatprep.mubr.bf16.mxu0 0
        %609 = vmatmul.mubr.bf16.gmra.mrb[0].mxu0 %v574
        %v610 = vpop.f32.mrb[0].mxu0
        %v611 = vadd.f32 0.0, %v610
        %v612 = vpop.f32.mrb[0].mxu0
        %v613 = vpop.f32.mrb[0].mxu0
        %v614 = vadd.f32 0.0, %v613
        %v615 = vpop.f32.mrb[0].mxu0
        %616 = vdwg.mxu0
        %v617 = vld [vmem:[%s440] sm:$0xff]
        %v618 = vld [vmem:[%s440 + $0x8] sm:$0xff]
        %v619 = vld [vmem:[%s449] sm:$0xff]
        %v620 = vld [vmem:[%s449 + $0x8] sm:$0xff]
        %v621 = vld [vmem:[#allocation11] sm:$0x1]
        %v622 = vmul.f32 %v611, %v611
        %v623 = vmul.f32 %v614, %v614
        %vm624 = vcmask 130048
        %v625 = vsel %vm624, %v622, 0.0
        %626 = vadd.xlane.f32.xlu0 %v625
        %v627 = vpop.xlane.xlu0 %626
        %v628 = vsel %vm624, %v623, 0.0
        %629 = vadd.xlane.f32.xlu0 %v628
        %v630 = vpop.xlane.xlu0 %629
        %v631 = vrcp.pop 16.0
        %v632 = vmul.f32 %v627, %v631
        %v633 = vmul.f32 %v630, %v631
        %v634 = vadd.f32 %v632, 1e-05
        %v635 = vadd.f32 %v633, 1e-05
        %v636 = vrsqrt.pop %v634
        %v637 = vrsqrt.pop %v635
        %v638 = vmul.f32 %v611, %v636
        %v639 = vmul.f32 %v614, %v637
        %v641 = vlaneseq
        %v642 = vshrl.u32 %v641, 7
        %v643 = vsub.s32 0, %v642
        %v644 = vrot.slane %v621, %v643
        %v646 = vmul.f32 %v638, %v644
        %v647 = vmul.f32 %v639, %v644
        %v648 = vmul.f32 %v646, %v617
        %v649 = vmul.f32 %v647, %v618
        %652 = vrot.lane.b32.xlu0 %v619, 8
        %v653 = vpop.permute.xlu0 %652
        %654 = vrot.lane.b32.xlu0 %v620, 8
        %v655 = vpop.permute.xlu0 %654
        %v658 = vmul.f32 %v646, %v653
        %v659 = vmul.f32 %v647, %v655
        %662 = vrot.lane.b32.xlu0 %v658, 120
        %v663 = vpop.permute.xlu0 %662
        %664 = vrot.lane.b32.xlu0 %v659, 120
        %v665 = vpop.permute.xlu0 %664
        %v668 = vadd.f32 %v648, %v663
        %v669 = vadd.f32 %v649, %v665
        %670 = vrot.lane.b32.xlu0 %v619, 120
        %v671 = vpop.permute.xlu0 %670
        %672 = vrot.lane.b32.xlu0 %v620, 120
        %v673 = vpop.permute.xlu0 %672
        %v676 = vmul.f32 %v646, %v671
        %v677 = vmul.f32 %v647, %v673
        %680 = vrot.lane.b32.xlu0 %v676, 8
        %v681 = vpop.permute.xlu0 %680
        %682 = vrot.lane.b32.xlu0 %v677, 8
        %v683 = vpop.permute.xlu0 %682
        %v686 = vadd.f32 %v648, %v681
        %v687 = vadd.f32 %v649, %v683
        %vm688 = vcmask 64512
        %v689 = vsel %vm688, %v668, %v686
        %v690 = vsel %vm688, %v669, %v687
        %v691 = vmul.f32 %v689, 0.25
        %v692 = vmul.f32 %v690, 0.25
        %v693 = vpack.c.bf16 %v692, %v691
        %696 = vrot.lane.b32.xlu0 %v622, 112
        %v697 = vpop.permute.xlu0 %696
        %698 = vrot.lane.b32.xlu0 %v623, 112
        %v699 = vpop.permute.xlu0 %698
        %v702 = vsel %vm624, %v697, 0.0
        %703 = vadd.xlane.f32.xlu0 %v702
        %v704 = vpop.xlane.xlu0 %703
        %v705 = vsel %vm624, %v699, 0.0
        %706 = vadd.xlane.f32.xlu0 %v705
        %v707 = vpop.xlane.xlu0 %706
        %v708 = vmul.f32 %v704, %v631
        %v709 = vmul.f32 %v707, %v631
        %v710 = vadd.f32 %v708, 1e-05
        %v711 = vadd.f32 %v709, 1e-05
        %v712 = vrsqrt.pop %v710
        %v713 = vrsqrt.pop %v711
        %v714 = vmul.f32 %v611, %v712
        %v715 = vmul.f32 %v614, %v713
        %716 = vrot.lane.b32.xlu0 %v644, 16
        %v717 = vpop.permute.xlu0 %716
        %v719 = vmul.f32 %v714, %v717
        %v720 = vmul.f32 %v715, %v717
        %723 = vrot.lane.b32.xlu0 %v617, 16
        %v724 = vpop.permute.xlu0 %723
        %725 = vrot.lane.b32.xlu0 %v618, 16
        %v726 = vpop.permute.xlu0 %725
        %v729 = vmul.f32 %v719, %v724
        %v730 = vmul.f32 %v720, %v726
        %731 = vrot.lane.b32.xlu0 %v619, 24
        %v732 = vpop.permute.xlu0 %731
        %733 = vrot.lane.b32.xlu0 %v620, 24
        %v734 = vpop.permute.xlu0 %733
        %v737 = vmul.f32 %v719, %v732
        %v738 = vmul.f32 %v720, %v734
        %741 = vrot.lane.b32.xlu0 %v737, 120
        %v742 = vpop.permute.xlu0 %741
        %743 = vrot.lane.b32.xlu0 %v738, 120
        %v744 = vpop.permute.xlu0 %743
        %v747 = vadd.f32 %v729, %v742
        %v748 = vadd.f32 %v730, %v744
        %v749 = vmul.f32 %v719, %v653
        %v750 = vmul.f32 %v720, %v655
        %753 = vrot.lane.b32.xlu0 %v749, 8
        %v754 = vpop.permute.xlu0 %753
        %755 = vrot.lane.b32.xlu0 %v750, 8
        %v756 = vpop.permute.xlu0 %755
        %v759 = vadd.f32 %v729, %v754
        %v760 = vadd.f32 %v730, %v756
        %763 = vrot.lane.b32.xlu0 %v747, 112
        %v764 = vpop.permute.xlu0 %763
        %765 = vrot.lane.b32.xlu0 %v748, 112
        %v766 = vpop.permute.xlu0 %765
        %771 = vrot.lane.b32.xlu0 %v759, 112
        %v772 = vpop.permute.xlu0 %771
        %773 = vrot.lane.b32.xlu0 %v760, 112
        %v774 = vpop.permute.xlu0 %773
        %v777 = vsel %vm688, %v764, %v772
        %v778 = vsel %vm688, %v766, %v774
        %v779 = vmul.f32 %v777, 0.25
        %v780 = vmul.f32 %v778, 0.25
        %v781 = vpack.c.bf16 %v780, %v779
        %782 = vrot.lane.b32.xlu0 %v622, 96
        %v783 = vpop.permute.xlu0 %782
        %784 = vrot.lane.b32.xlu0 %v623, 96
        %v785 = vpop.permute.xlu0 %784
        %v788 = vsel %vm624, %v783, 0.0
        %789 = vadd.xlane.f32.xlu0 %v788
        %v790 = vpop.xlane.xlu0 %789
        %v791 = vsel %vm624, %v785, 0.0
        %792 = vadd.xlane.f32.xlu0 %v791
        %v793 = vpop.xlane.xlu0 %792
        %v794 = vmul.f32 %v790, %v631
        %v795 = vmul.f32 %v793, %v631
        %v796 = vadd.f32 %v794, 1e-05
        %v797 = vadd.f32 %v795, 1e-05
        %v798 = vrsqrt.pop %v796
        %v799 = vrsqrt.pop %v797
        %v800 = vmul.f32 %v611, %v798
        %v801 = vmul.f32 %v614, %v799
        %802 = vrot.lane.b32.xlu0 %v644, 32
        %v803 = vpop.permute.xlu0 %802
        %v805 = vmul.f32 %v800, %v803
        %v806 = vmul.f32 %v801, %v803
        %807 = vrot.lane.b32.xlu0 %v617, 32
        %v808 = vpop.permute.xlu0 %807
        %809 = vrot.lane.b32.xlu0 %v618, 32
        %v810 = vpop.permute.xlu0 %809
        %v813 = vmul.f32 %v805, %v808
        %v814 = vmul.f32 %v806, %v810
        %815 = vrot.lane.b32.xlu0 %v619, 40
        %v816 = vpop.permute.xlu0 %815
        %817 = vrot.lane.b32.xlu0 %v620, 40
        %v818 = vpop.permute.xlu0 %817
        %v821 = vmul.f32 %v805, %v816
        %v822 = vmul.f32 %v806, %v818
        %825 = vrot.lane.b32.xlu0 %v821, 120
        %v826 = vpop.permute.xlu0 %825
        %827 = vrot.lane.b32.xlu0 %v822, 120
        %v828 = vpop.permute.xlu0 %827
        %v831 = vadd.f32 %v813, %v826
        %v832 = vadd.f32 %v814, %v828
        %v833 = vmul.f32 %v805, %v732
        %v834 = vmul.f32 %v806, %v734
        %837 = vrot.lane.b32.xlu0 %v833, 8
        %v838 = vpop.permute.xlu0 %837
        %839 = vrot.lane.b32.xlu0 %v834, 8
        %v840 = vpop.permute.xlu0 %839
        %v843 = vadd.f32 %v813, %v838
        %v844 = vadd.f32 %v814, %v840
        %847 = vrot.lane.b32.xlu0 %v831, 96
        %v848 = vpop.permute.xlu0 %847
        %849 = vrot.lane.b32.xlu0 %v832, 96
        %v850 = vpop.permute.xlu0 %849
        %855 = vrot.lane.b32.xlu0 %v843, 96
        %v856 = vpop.permute.xlu0 %855
        %857 = vrot.lane.b32.xlu0 %v844, 96
        %v858 = vpop.permute.xlu0 %857
        %v861 = vsel %vm688, %v848, %v856
        %v862 = vsel %vm688, %v850, %v858
        %v863 = vmul.f32 %v861, 0.25
        %v864 = vmul.f32 %v862, 0.25
        %v865 = vpack.c.bf16 %v864, %v863
        %866 = vrot.lane.b32.xlu0 %v622, 80
        %v867 = vpop.permute.xlu0 %866
        %868 = vrot.lane.b32.xlu0 %v623, 80
        %v869 = vpop.permute.xlu0 %868
        %v872 = vsel %vm624, %v867, 0.0
        %873 = vadd.xlane.f32.xlu0 %v872
        %v874 = vpop.xlane.xlu0 %873
        %v875 = vsel %vm624, %v869, 0.0
        %876 = vadd.xlane.f32.xlu0 %v875
        %v877 = vpop.xlane.xlu0 %876
        %v878 = vmul.f32 %v874, %v631
        %v879 = vmul.f32 %v877, %v631
        %v880 = vadd.f32 %v878, 1e-05
        %v881 = vadd.f32 %v879, 1e-05
        %v882 = vrsqrt.pop %v880
        %v883 = vrsqrt.pop %v881
        %v884 = vmul.f32 %v611, %v882
        %v885 = vmul.f32 %v614, %v883
        %886 = vrot.lane.b32.xlu0 %v644, 48
        %v887 = vpop.permute.xlu0 %886
        %v889 = vmul.f32 %v884, %v887
        %v890 = vmul.f32 %v885, %v887
        %891 = vrot.lane.b32.xlu0 %v617, 48
        %v892 = vpop.permute.xlu0 %891
        %893 = vrot.lane.b32.xlu0 %v618, 48
        %v894 = vpop.permute.xlu0 %893
        %v897 = vmul.f32 %v889, %v892
        %v898 = vmul.f32 %v890, %v894
        %899 = vrot.lane.b32.xlu0 %v619, 56
        %v900 = vpop.permute.xlu0 %899
        %901 = vrot.lane.b32.xlu0 %v620, 56
        %v902 = vpop.permute.xlu0 %901
        %v905 = vmul.f32 %v889, %v900
        %v906 = vmul.f32 %v890, %v902
        %909 = vrot.lane.b32.xlu0 %v905, 120
        %v910 = vpop.permute.xlu0 %909
        %911 = vrot.lane.b32.xlu0 %v906, 120
        %v912 = vpop.permute.xlu0 %911
        %v915 = vadd.f32 %v897, %v910
        %v916 = vadd.f32 %v898, %v912
        %v917 = vmul.f32 %v889, %v816
        %v918 = vmul.f32 %v890, %v818
        %921 = vrot.lane.b32.xlu0 %v917, 8
        %v922 = vpop.permute.xlu0 %921
        %923 = vrot.lane.b32.xlu0 %v918, 8
        %v924 = vpop.permute.xlu0 %923
        %v927 = vadd.f32 %v897, %v922
        %v928 = vadd.f32 %v898, %v924
        %931 = vrot.lane.b32.xlu0 %v915, 80
        %v932 = vpop.permute.xlu0 %931
        %933 = vrot.lane.b32.xlu0 %v916, 80
        %v934 = vpop.permute.xlu0 %933
        %939 = vrot.lane.b32.xlu0 %v927, 80
        %v940 = vpop.permute.xlu0 %939
        %941 = vrot.lane.b32.xlu0 %v928, 80
        %v942 = vpop.permute.xlu0 %941
        %v945 = vsel %vm688, %v932, %v940
        %v946 = vsel %vm688, %v934, %v942
        %v947 = vmul.f32 %v945, 0.25
        %v948 = vmul.f32 %v946, 0.25
        %v949 = vpack.c.bf16 %v948, %v947
        %v954 = vunpack.c.l.b16 %v693
        %v955 = vunpack.c.h.b16 %v693
        %v956 = vunpack.c.l.b16 %v781
        %v957 = vunpack.c.h.b16 %v781
        %v958 = vunpack.c.l.b16 %v865
        %v959 = vunpack.c.h.b16 %v865
        %v960 = vunpack.c.l.b16 %v949
        %v961 = vunpack.c.h.b16 %v949
        %v962 = vpack.c.b16 %v954, %v954
        %v963 = vpack.c.b16 %v955, %v955
        %v964 = vpack.c.b16 %v956, %v956
        %v965 = vpack.c.b16 %v957, %v957
        %v966 = vpack.c.b16 %v958, %v958
        %v967 = vpack.c.b16 %v959, %v959
        %v968 = vpack.c.b16 %v960, %v960
        %v969 = vpack.c.b16 %v961, %v961
        %vm978 = vcmask 125952
        %979 = vst.msk [vmem:[%s505] sm:$0xf] %vm978, %v962
        %980 = vst.msk [vmem:[%s505 + $0x4] sm:$0xf] %vm978, %v963
        %981 = vst.msk [vmem:[%s505 + $0x8] sm:$0xf] %vm978, %v964
        %982 = vst.msk [vmem:[%s505 + $0xc] sm:$0xf] %vm978, %v965
        %983 = vst.msk [vmem:[%s505 + $0x10] sm:$0xf] %vm978, %v966
        %984 = vst.msk [vmem:[%s505 + $0x14] sm:$0xf] %vm978, %v967
        %985 = vst.msk [vmem:[%s505 + $0x18] sm:$0xf] %vm978, %v968
        %986 = vst.msk [vmem:[%s505 + $0x1c] sm:$0xf] %vm978, %v969
        %v987 = vld [vmem:[#allocation13] sm:$0x1]
        %988 = vrot.lane.b32.xlu0 %v622, 64
        %v989 = vpop.permute.xlu0 %988
        %990 = vrot.lane.b32.xlu0 %v623, 64
        %v991 = vpop.permute.xlu0 %990
        %v994 = vsel %vm624, %v989, 0.0
        %995 = vadd.xlane.f32.xlu0 %v994
        %v996 = vpop.xlane.xlu0 %995
        %v997 = vsel %vm624, %v991, 0.0
        %998 = vadd.xlane.f32.xlu0 %v997
        %v999 = vpop.xlane.xlu0 %998
        %v1000 = vmul.f32 %v996, %v631
        %v1001 = vmul.f32 %v999, %v631
        %v1002 = vadd.f32 %v1000, 1e-05
        %v1003 = vadd.f32 %v1001, 1e-05
        %v1004 = vrsqrt.pop %v1002
        %v1005 = vrsqrt.pop %v1003
        %v1006 = vmul.f32 %v611, %v1004
        %v1007 = vmul.f32 %v614, %v1005
        %v1009 = vlaneseq
        %v1010 = vshrl.u32 %v1009, 7
        %v1011 = vsub.s32 0, %v1010
        %v1012 = vrot.slane %v987, %v1011
        %1013 = vrot.lane.b32.xlu0 %v1012, 64
        %v1014 = vpop.permute.xlu0 %1013
        %v1016 = vmul.f32 %v1006, %v1014
        %v1017 = vmul.f32 %v1007, %v1014
        %1018 = vrot.lane.b32.xlu0 %v617, 64
        %v1019 = vpop.permute.xlu0 %1018
        %1020 = vrot.lane.b32.xlu0 %v618, 64
        %v1021 = vpop.permute.xlu0 %1020
        %v1024 = vmul.f32 %v1016, %v1019
        %v1025 = vmul.f32 %v1017, %v1021
        %1026 = vrot.lane.b32.xlu0 %v619, 72
        %v1027 = vpop.permute.xlu0 %1026
        %1028 = vrot.lane.b32.xlu0 %v620, 72
        %v1029 = vpop.permute.xlu0 %1028
        %v1032 = vmul.f32 %v1016, %v1027
        %v1033 = vmul.f32 %v1017, %v1029
        %1036 = vrot.lane.b32.xlu0 %v1032, 120
        %v1037 = vpop.permute.xlu0 %1036
        %1038 = vrot.lane.b32.xlu0 %v1033, 120
        %v1039 = vpop.permute.xlu0 %1038
        %v1042 = vadd.f32 %v1024, %v1037
        %v1043 = vadd.f32 %v1025, %v1039
        %v1044 = vmul.f32 %v1016, %v900
        %v1045 = vmul.f32 %v1017, %v902
        %1048 = vrot.lane.b32.xlu0 %v1044, 8
        %v1049 = vpop.permute.xlu0 %1048
        %1050 = vrot.lane.b32.xlu0 %v1045, 8
        %v1051 = vpop.permute.xlu0 %1050
        %v1054 = vadd.f32 %v1024, %v1049
        %v1055 = vadd.f32 %v1025, %v1051
        %1058 = vrot.lane.b32.xlu0 %v1042, 64
        %v1059 = vpop.permute.xlu0 %1058
        %1060 = vrot.lane.b32.xlu0 %v1043, 64
        %v1061 = vpop.permute.xlu0 %1060
        %1066 = vrot.lane.b32.xlu0 %v1054, 64
        %v1067 = vpop.permute.xlu0 %1066
        %1068 = vrot.lane.b32.xlu0 %v1055, 64
        %v1069 = vpop.permute.xlu0 %1068
        %v1072 = vsel %vm688, %v1059, %v1067
        %v1073 = vsel %vm688, %v1061, %v1069
        %v1074 = vpack.c.bf16 %v1073, %v1072
        %v1075 = vpack.c.bf16 %v614, %v611
        %1076 = vrot.lane.b32.xlu0 %v622, 48
        %v1077 = vpop.permute.xlu0 %1076
        %1078 = vrot.lane.b32.xlu0 %v623, 48
        %v1079 = vpop.permute.xlu0 %1078
        %v1082 = vsel %vm624, %v1077, 0.0
        %1083 = vadd.xlane.f32.xlu0 %v1082
        %v1084 = vpop.xlane.xlu0 %1083
        %v1085 = vsel %vm624, %v1079, 0.0
        %1086 = vadd.xlane.f32.xlu0 %v1085
        %v1087 = vpop.xlane.xlu0 %1086
        %v1088 = vmul.f32 %v1084, %v631
        %v1089 = vmul.f32 %v1087, %v631
        %v1090 = vadd.f32 %v1088, 1e-05
        %v1091 = vadd.f32 %v1089, 1e-05
        %v1092 = vrsqrt.pop %v1090
        %v1093 = vrsqrt.pop %v1091
        %v1094 = vmul.f32 %v611, %v1092
        %v1095 = vmul.f32 %v614, %v1093
        %1096 = vrot.lane.b32.xlu0 %v1012, 80
        %v1097 = vpop.permute.xlu0 %1096
        %v1099 = vmul.f32 %v1094, %v1097
        %v1100 = vmul.f32 %v1095, %v1097
        %1101 = vrot.lane.b32.xlu0 %v617, 80
        %v1102 = vpop.permute.xlu0 %1101
        %1103 = vrot.lane.b32.xlu0 %v618, 80
        %v1104 = vpop.permute.xlu0 %1103
        %v1107 = vmul.f32 %v1099, %v1102
        %v1108 = vmul.f32 %v1100, %v1104
        %1109 = vrot.lane.b32.xlu0 %v619, 88
        %v1110 = vpop.permute.xlu0 %1109
        %1111 = vrot.lane.b32.xlu0 %v620, 88
        %v1112 = vpop.permute.xlu0 %1111
        %v1115 = vmul.f32 %v1099, %v1110
        %v1116 = vmul.f32 %v1100, %v1112
        %1119 = vrot.lane.b32.xlu0 %v1115, 120
        %v1120 = vpop.permute.xlu0 %1119
        %1121 = vrot.lane.b32.xlu0 %v1116, 120
        %v1122 = vpop.permute.xlu0 %1121
        %v1125 = vadd.f32 %v1107, %v1120
        %v1126 = vadd.f32 %v1108, %v1122
        %v1127 = vmul.f32 %v1099, %v1027
        %v1128 = vmul.f32 %v1100, %v1029
        %1131 = vrot.lane.b32.xlu0 %v1127, 8
        %v1132 = vpop.permute.xlu0 %1131
        %1133 = vrot.lane.b32.xlu0 %v1128, 8
        %v1134 = vpop.permute.xlu0 %1133
        %v1137 = vadd.f32 %v1107, %v1132
        %v1138 = vadd.f32 %v1108, %v1134
        %1141 = vrot.lane.b32.xlu0 %v1125, 48
        %v1142 = vpop.permute.xlu0 %1141
        %1143 = vrot.lane.b32.xlu0 %v1126, 48
        %v1144 = vpop.permute.xlu0 %1143
        %1149 = vrot.lane.b32.xlu0 %v1137, 48
        %v1150 = vpop.permute.xlu0 %1149
        %1151 = vrot.lane.b32.xlu0 %v1138, 48
        %v1152 = vpop.permute.xlu0 %1151
        %v1155 = vsel %vm688, %v1142, %v1150
        %v1156 = vsel %vm688, %v1144, %v1152
        %v1157 = vpack.c.bf16 %v1156, %v1155
        %v1160 = vunpack.c.l.b16 %v1074
        %v1161 = vunpack.c.h.b16 %v1074
        %v1162 = vunpack.c.l.b16 %v1157
        %v1163 = vunpack.c.h.b16 %v1157
        %v1164 = vpack.c.b16 %v1160, %v1160
        %v1165 = vpack.c.b16 %v1161, %v1161
        %v1166 = vpack.c.b16 %v1162, %v1162
        %v1167 = vpack.c.b16 %v1163, %v1163
        %1172 = vst.msk [vmem:[%s512] sm:$0xf] %vm978, %v1164
        %1173 = vst.msk [vmem:[%s512 + $0x4] sm:$0xf] %vm978, %v1165
        %1174 = vst.msk [vmem:[%s512 + $0x8] sm:$0xf] %vm978, %v1166
        %1175 = vst.msk [vmem:[%s512 + $0xc] sm:$0xf] %vm978, %v1167
        %1177 = vrot.lane.b32.xlu0 %v1075, 112
        %v1178 = vpop.permute.xlu0 %1177
        %v1179 = vunpack.c.l.b16 %v1075
        %v1180 = vunpack.c.h.b16 %v1075
        %v1181 = vunpack.c.l.b16 %v1178
        %v1182 = vunpack.c.h.b16 %v1178
        %v1183 = vpack.c.b16 %v1179, %v1179
        %v1184 = vpack.c.b16 %v1180, %v1180
        %v1185 = vpack.c.b16 %v1181, %v1181
        %v1186 = vpack.c.b16 %v1182, %v1182
        %1187 = vrot.lane.b32.xlu0 %v1183, 32
        %v1188 = vpop.permute.xlu0 %1187
        %1189 = vrot.lane.b32.xlu0 %v1184, 32
        %v1190 = vpop.permute.xlu0 %1189
        %1191 = vrot.lane.b32.xlu0 %v1185, 32
        %v1192 = vpop.permute.xlu0 %1191
        %1193 = vrot.lane.b32.xlu0 %v1186, 32
        %v1194 = vpop.permute.xlu0 %1193
        %1199 = vst.msk [vmem:[%s519] sm:$0xf] %vm978, %v1188
        %1200 = vst.msk [vmem:[%s519 + $0x4] sm:$0xf] %vm978, %v1190
        %1201 = vst.msk [vmem:[%s519 + $0x8] sm:$0xf] %vm978, %v1192
        %1202 = vst.msk [vmem:[%s519 + $0xc] sm:$0xf] %vm978, %v1194
        %s1203 = sand.u32 %s221, 1
        %s1204 = scalar_lea.sflag [#allocation4], %s1203
        %s1205 = sand.u32 %s221, 1
        %s1206 = smul.addr %s1205, 32
        %s1207 = scalar_lea.vmem [#allocation14], %s1206
        %s1208 = sand.u32 %s35, 1
        %s1209 = scalar_lea.sflag [#allocation16], %s1208
        %s1210 = sand.u32 %s249, 1
        %s1211 = smul.addr %s1210, 16
        %s1212 = scalar_lea.vmem [#allocation15], %s1211
        %s1213 = sand.u32 %s35, 1
        %s1214 = scalar_lea.sflag [#allocation16], %s1213
        %s1215 = sand.u32 %s277, 1
        %s1216 = smul.addr %s1215, 16
        %s1217 = scalar_lea.vmem [#allocation17], %s1216
        // Predicated region
        $region77: #{tpu_custom_call.1} parent=47 // pred_check
          %p1218 = pneg %p231
        $region78: #{tpu_custom_call.1} parent=47 // pred_check_branch
          %1220 = sbr.rel (%p1218) target = $region80
        $region79: #{tpu_custom_call.1} parent=47 // pred_region
          #allocation19 [shape = 'u32[6]{0}', space=smem, size = 0x18, scoped, tag = 'DMA stride descriptor']
          %s1221 = smul.u32 2, %s40
          %s1223 = ssub.s32 512, 512
          %1224 = vsyncadd %s1204, %s1223
          %s1225 = smul.addr %s39, 16
          %s1226 = sadd.s32 %s1221, %s1225
          %s1227 = smul.addr %s1226, 64
          %s1228 = scalar_lea.hbm %s7, %s1227
          %s1230 = sshll.u32 1, 14
          %s1231 = sxor.u32 4294967295, %s1230
          %s1234 = sshll.u32 7, 18
          %s1235 = sxor.u32 4294967295, %s1234
          %s1236 = sand.u32 0, %s1235
          %s1238 = sor.u32 %s1236, 0
          %s1240 = sshll.u32 3, 24
          %s1241 = sxor.u32 4294967295, %s1240
          %s1242 = sand.u32 %s1238, %s1241
          %s1244 = sor.u32 %s1242, 0
          %s1245 = sshll.u32 %s1207, 4
          %s1246 = int_to_ptr.vmem [resolvable:$true] %s1245
          %1252 = sst [smem:[#allocation19]] 128
          %s1253 = scalar_lea.smem [#allocation19], 1
          %1254 = sst [smem:[%s1253]] 256
          %s1255 = scalar_lea.smem [#allocation19], 2
          %1256 = sst [smem:[%s1255]] 2
          %s1257 = scalar_lea.smem [#allocation19], 3
          %1258 = sst [smem:[%s1257]] 64
          %s1259 = scalar_lea.smem [#allocation19], 4
          %1260 = sst [smem:[%s1259]] 64
          %s1261 = scalar_lea.smem [#allocation19], 5
          %1262 = sst [smem:[%s1261]] 4
          %1264 = dma.general %s1246, 512, %s1228, %s1204, [#allocation18], [#allocation19], %s1244, 0
        $region80: #{tpu_custom_call.1} parent=47 // pred_fallthru
          _
        // Predicated region
        $region81: #{tpu_custom_call.1} parent=47 // pred_check
          %p1265 = pneg %p259
        $region82: #{tpu_custom_call.1} parent=47 // pred_check_branch
          %1267 = sbr.rel (%p1265) target = $region84
        $region83: #{tpu_custom_call.1} parent=47 // pred_region
          #allocation21 [shape = 'u32[6]{0}', space=smem, size = 0x18, scoped, tag = 'DMA stride descriptor']
          %s1268 = smul.u32 2, %s40
          %s1270 = ssub.s32 256, 256
          %1271 = vsyncadd %s1209, %s1270
          %s1272 = smul.addr %s39, 8
          %s1273 = sadd.s32 %s1268, %s1272
          %s1274 = smul.addr %s1273, 64
          %s1275 = scalar_lea.hbm %s8, %s1274
          %s1277 = sshll.u32 1, 14
          %s1278 = sxor.u32 4294967295, %s1277
          %s1281 = sshll.u32 7, 18
          %s1282 = sxor.u32 4294967295, %s1281
          %s1283 = sand.u32 0, %s1282
          %s1285 = sor.u32 %s1283, 0
          %s1287 = sshll.u32 3, 24
          %s1288 = sxor.u32 4294967295, %s1287
          %s1289 = sand.u32 %s1285, %s1288
          %s1291 = sor.u32 %s1289, 0
          %s1292 = sshll.u32 %s1212, 4
          %s1293 = int_to_ptr.vmem [resolvable:$true] %s1292
          %1299 = sst [smem:[#allocation21]] 128
          %s1300 = scalar_lea.smem [#allocation21], 1
          %1301 = sst [smem:[%s1300]] 256
          %s1302 = scalar_lea.smem [#allocation21], 2
          %1303 = sst [smem:[%s1302]] 2
          %s1304 = scalar_lea.smem [#allocation21], 3
          %1305 = sst [smem:[%s1304]] 64
          %s1306 = scalar_lea.smem [#allocation21], 4
          %1307 = sst [smem:[%s1306]] 64
          %s1308 = scalar_lea.smem [#allocation21], 5
          %1309 = sst [smem:[%s1308]] 4
          %1311 = dma.general %s1293, 256, %s1275, %s1209, [#allocation20], [#allocation21], %s1291, 0
        $region84: #{tpu_custom_call.1} parent=47 // pred_fallthru
          _
        // Predicated region
        $region85: #{tpu_custom_call.1} parent=47 // pred_check
          %p1312 = pneg %p287
        $region86: #{tpu_custom_call.1} parent=47 // pred_check_branch
          %1314 = sbr.rel (%p1312) target = $region88
        $region87: #{tpu_custom_call.1} parent=47 // pred_region
          #allocation23 [shape = 'u32[6]{0}', space=smem, size = 0x18, scoped, tag = 'DMA stride descriptor']
          %s1315 = smul.u32 2, %s40
          %s1317 = ssub.s32 256, 256
          %1318 = vsyncadd %s1214, %s1317
          %s1319 = smul.addr %s39, 8
          %s1320 = sadd.s32 %s1315, %s1319
          %s1321 = smul.addr %s1320, 64
          %s1322 = scalar_lea.hbm %s9, %s1321
          %s1324 = sshll.u32 1, 14
          %s1325 = sxor.u32 4294967295, %s1324
          %s1328 = sshll.u32 7, 18
          %s1329 = sxor.u32 4294967295, %s1328
          %s1330 = sand.u32 0, %s1329
          %s1332 = sor.u32 %s1330, 0
          %s1334 = sshll.u32 3, 24
          %s1335 = sxor.u32 4294967295, %s1334
          %s1336 = sand.u32 %s1332, %s1335
          %s1338 = sor.u32 %s1336, 0
          %s1339 = sshll.u32 %s1217, 4
          %s1340 = int_to_ptr.vmem [resolvable:$true] %s1339
          %1346 = sst [smem:[#allocation23]] 128
          %s1347 = scalar_lea.smem [#allocation23], 1
          %1348 = sst [smem:[%s1347]] 256
          %s1349 = scalar_lea.smem [#allocation23], 2
          %1350 = sst [smem:[%s1349]] 2
          %s1351 = scalar_lea.smem [#allocation23], 3
          %1352 = sst [smem:[%s1351]] 64
          %s1353 = scalar_lea.smem [#allocation23], 4
          %1354 = sst [smem:[%s1353]] 64
          %s1355 = scalar_lea.smem [#allocation23], 5
          %1356 = sst [smem:[%s1355]] 4
          %1358 = dma.general %s1340, 256, %s1322, %s1214, [#allocation22], [#allocation23], %s1338, 0
        $region88: #{tpu_custom_call.1} parent=47 // pred_fallthru
          _
      $region48: #{tpu_custom_call.1} parent=5 // pred_fallthru
        _
      %p1359 = scmp.le.s32.totalorder 2, %s30
      // Predicated region
      $region89: #{tpu_custom_call.1} parent=5 // pred_check
        %p1360 = pneg %p1359
      $region90: #{tpu_custom_call.1} parent=5 // pred_check_branch
        %1362 = sbr.rel (%p1360) target = $region92
      $region91: #{tpu_custom_call.1} parent=5 // pred_region
        %s1363 = ssub.s32 %s30, 2
        // Predicated region
        $region93: #{tpu_custom_call.1} parent=91 // pred_check
          %p1364 = pneg %p237
        $region94: #{tpu_custom_call.1} parent=91 // pred_check_branch
          %1366 = sbr.rel (%p1364) target = $region96
        $region95: #{tpu_custom_call.1} parent=91 // pred_region
          %s1367 = sand.u32 %s222, 1
          %s1368 = scalar_lea.sflag [#allocation4], %s1367
          %s1369 = sand.u32 %s222, 1
          %s1370 = smul.addr %s1369, 32
          %s1371 = scalar_lea.vmem [#allocation14], %s1370
          %1372 = dma.done %s1368, 512
        $region96: #{tpu_custom_call.1} parent=91 // pred_fallthru
          _
        // Predicated region
        $region97: #{tpu_custom_call.1} parent=91 // pred_check
          %p1373 = pneg %p265
        $region98: #{tpu_custom_call.1} parent=91 // pred_check_branch
          %1375 = sbr.rel (%p1373) target = $region100
        $region99: #{tpu_custom_call.1} parent=91 // pred_region
          %s1376 = sand.u32 %s36, 1
          %s1377 = scalar_lea.sflag [#allocation16], %s1376
          %s1378 = sand.u32 %s250, 1
          %s1379 = smul.addr %s1378, 16
          %s1380 = scalar_lea.vmem [#allocation15], %s1379
          %1381 = dma.done %s1377, 256
        $region100: #{tpu_custom_call.1} parent=91 // pred_fallthru
          _
        // Predicated region
        $region101: #{tpu_custom_call.1} parent=91 // pred_check
          %p1382 = pneg %p293
        $region102: #{tpu_custom_call.1} parent=91 // pred_check_branch
          %1384 = sbr.rel (%p1382) target = $region104
        $region103: #{tpu_custom_call.1} parent=91 // pred_region
          %s1385 = sand.u32 %s36, 1
          %s1386 = scalar_lea.sflag [#allocation16], %s1385
          %s1387 = sand.u32 %s278, 1
          %s1388 = smul.addr %s1387, 16
          %s1389 = scalar_lea.vmem [#allocation17], %s1388
          %1390 = dma.done %s1386, 256
        $region104: #{tpu_custom_call.1} parent=91 // pred_fallthru
          _
      $region92: #{tpu_custom_call.1} parent=5 // pred_fallthru
        _
    $region6: #{tpu_custom_call.1} parent=1 // loop_footer
      %s34 = sadd.s32 1, %s30
    $region7: #{tpu_custom_call.1} parent=1 // loop_footer_branch
      %29 = sbr.rel target = $region3
    $region8: #{tpu_custom_call.1} parent=1 // loop_exit
      _
    %1391 = vsyncpa [#allocation3], 1
    %s1392 = scalar_lea.sflag [#allocation3], 1
    %1393 = vsyncpa %s1392, 1
    %1394 = vsyncpa [#allocation6], 1
    %s1395 = scalar_lea.sflag [#allocation6], 1
    %1396 = vsyncpa %s1395, 1
    %1397 = vsyncpa [#allocation9], 1
    %1398 = vsyncpa [#allocation12], 1
    %1399 = vsyncpa [#allocation4], 1
    %s1400 = scalar_lea.sflag [#allocation4], 1
    %1401 = vsyncpa %s1400, 1
    %1402 = vsyncpa [#allocation16], 1
    %s1403 = scalar_lea.sflag [#allocation16], 1
    %1404 = vsyncpa %s1403, 1

</llo_original>
